<compile_context>
chip_gen: v7x
topology: tpu7x:2x2x1
jax: 0.10.0
libtpu: 0.0.40
codegen_flags: <defaults>
</compile_context>

<pallas_src>
import functools
import math

import jax
import jax.numpy as jnp
import numpy as np
from jax.experimental import pallas as pl
from jax.experimental.pallas import tpu as pltpu


# ---------------------------------------------------------------------------
# Kernel
# ---------------------------------------------------------------------------
def _layernorm_f32(x, gamma, beta, eps=1e-5):
    # PyTorch LayerNorm semantics (biased variance), fp32, two-pass variance.
    mean = jnp.mean(x, axis=-1, keepdims=True)
    d = x - mean
    var = jnp.mean(d * d, axis=-1, keepdims=True)
    return d * jax.lax.rsqrt(var + eps) * gamma + beta


def resblock_kernel(x_ref,
                    ln1_g_ref, ln1_b_ref,
                    wqkv_ref, bqkv_ref,
                    wattn_ref, battn_ref,
                    ln2_g_ref, ln2_b_ref,
                    wfc_ref, bfc_ref,
                    wmlp_ref, bmlp_ref,
                    o_ref, *, heads):
    layer = pl.program_id(1)

    # Layer 0: seed the residual-stream carry.  The output block is resident
    # across the whole 'arbitrary' layer axis, so it acts as the carry.
    @pl.when(layer == 0)
    def _():
        o_ref[...] = x_ref[...]

    Bb, T, W = o_ref.shape
    C = W // heads
    tokens = Bb * T

    # Token-major view: all token-wise linears run with M = Bb*T.
    x = o_ref[...].astype(jnp.float32).reshape(tokens, W)

    # ---------------- attention branch ----------------
    h = _layernorm_f32(x, ln1_g_ref[0], ln1_b_ref[0])             # (tok, W) fp32
    # wqkv is pre-permuted to [Q | K | V] slabs (head-major inside each slab),
    # bf16, with the 1/sqrt(sqrt(C)) scale folded into the Q and K slabs.
    qkv = jnp.dot(h.astype(jnp.bfloat16), wqkv_ref[0],
                  preferred_element_type=jnp.float32) + bqkv_ref[0]  # (tok, 3W)

    q = qkv[:, 0 * W:1 * W].astype(jnp.bfloat16).reshape(Bb, T, W)
    k = qkv[:, 1 * W:2 * W].astype(jnp.bfloat16).reshape(Bb, T, W)
    v = qkv[:, 2 * W:3 * W].astype(jnp.bfloat16).reshape(Bb, T, W)

    wattn = wattn_ref[0]                                          # (W, W) bf16
    attn_out = jnp.zeros((tokens, W), jnp.float32)
    # Per-head loop: lane slices feed the MXU directly (no stack/concat); the
    # output projection is accumulated from row slabs of wattn.
    for hh in range(heads):
        sl = slice(hh * C, (hh + 1) * C)
        s = jnp.einsum('bqc,bkc->bqk', q[:, :, sl], k[:, :, sl],
                       preferred_element_type=jnp.float32)        # (Bb, T, T)
        s = s - jnp.max(s, axis=-1, keepdims=True)
        p = jnp.exp(s)
        # approx reciprocal runs on the EUP slot; normalisation is folded into
        # the small (Bb, T, C) per-head output, not the (T, T) probabilities.
        inv = pl.reciprocal(jnp.sum(p, axis=-1, keepdims=True), approx=True)
        a = jnp.einsum('bqk,bkc->bqc', p.astype(jnp.bfloat16), v[:, :, sl],
                       preferred_element_type=jnp.float32)        # (Bb, T, C)
        a = (a * inv).astype(jnp.bfloat16).reshape(tokens, C)
        attn_out = attn_out + jnp.dot(a, wattn[sl, :],
                                      preferred_element_type=jnp.float32)
    x = x + attn_out + battn_ref[0]

    # ---------------- MLP branch ----------------
    h2 = _layernorm_f32(x, ln2_g_ref[0], ln2_b_ref[0])
    fc = jnp.dot(h2.astype(jnp.bfloat16), wfc_ref[0],
                 preferred_element_type=jnp.float32) + bfc_ref[0]     # (tok, 4W)
    # Exact (erf) GELU — PyTorch nn.GELU() default — in fp32.
    # TODO(synk): on v6e/v7x compute erf/exp on bf16 if a bundle dump shows
    #             the EUP slot binding.
    fc = 0.5 * fc * (1.0 + jax.lax.erf(fc * jnp.float32(1.0 / math.sqrt(2.0))))
    mlp = jnp.dot(fc.astype(jnp.bfloat16), wmlp_ref[0],
                  preferred_element_type=jnp.float32) + bmlp_ref[0]   # (tok, W)

    o_ref[...] = (x + mlp).reshape(Bb, T, W).astype(o_ref.dtype)


# ---------------------------------------------------------------------------
# Wrapper / pallas_call construction
# ---------------------------------------------------------------------------
def _vmem_capacity_bytes():
    try:
        info = pltpu.get_tpu_info()
        cap = int(getattr(info, "vmem_capacity_bytes", 0) or 0)
        if cap > 0:
            return cap
    except Exception:
        pass
    return 64 << 20          # conservative fallback: v7x per-core VMEM


def _vmem_limit_bytes(Bb, T, W, heads):
    tokens = Bb * T
    weights = 2 * (12 * W * W + 10 * W) * 2        # bf16 weights, double-buffered
    io = 2 * 2 * (Bb * T * W) * 4                  # x + out blocks, double-buffered
    acts = 4 * (tokens * 3 * W + tokens * 4 * W
                + 4 * tokens * W + 3 * Bb * T * T) * 4
    limit = int(1.3 * (weights + io + acts)) + (4 << 20)
    cap = _vmem_capacity_bytes() - (8 << 20)       # leave headroom on-chip
    return int(max(8 << 20, min(max(limit, 16 << 20), cap)))


def make_transformer_call(B, T, W, layers, heads, dtype, batch_blocks=None):
    if batch_blocks is None:
        # >=2 parallel blocks keeps both v7x TensorCores busy; set to 1 on
        # v5e/v6e to stream each layer's weights exactly once.
        batch_blocks = 2 if (B >= 2 and B % 2 == 0) else 1
    assert B % batch_blocks == 0, "batch must divide evenly into batch_blocks"
    Bb = B // batch_blocks

    kernel = functools.partial(resblock_kernel, heads=heads)

    def wspec(*shape):
        n = len(shape)
        return pl.BlockSpec((1,) + shape, lambda b, l, n=n: (l,) + (0,) * n)

    in_specs = [
        pl.BlockSpec((Bb, T, W), lambda b, l: (b, 0, 0)),  # x (read at layer 0)
        wspec(1, W), wspec(1, W),                          # ln1 gamma, beta
        wspec(W, 3 * W), wspec(1, 3 * W),                  # c_qkv (permuted+scaled)
        wspec(W, W), wspec(1, W),                          # attn c_proj
        wspec(1, W), wspec(1, W),                          # ln2 gamma, beta
        wspec(W, 4 * W), wspec(1, 4 * W),                  # mlp c_fc
        wspec(4 * W, W), wspec(1, W),                      # mlp c_proj
    ]
    return pl.pallas_call(
        kernel,
        out_shape=jax.ShapeDtypeStruct((B, T, W), dtype),
        grid=(batch_blocks, layers),
        in_specs=in_specs,
        out_specs=pl.BlockSpec((Bb, T, W), lambda b, l: (b, 0, 0)),
        compiler_params=pltpu.CompilerParams(
            dimension_semantics=("parallel", "arbitrary"),
            vmem_limit_bytes=_vmem_limit_bytes(Bb, T, W, heads)),
    )


def init_transformer_params(key, width, layers):
    params = []
    for _ in range(layers):
        keys = jax.random.split(key, 7)
        key = keys[0]
        p = {
            "ln1_g": jnp.ones((1, width), jnp.float32),
            "ln1_b": jnp.zeros((1, width), jnp.float32),
            "wqkv": 0.02 * jax.random.normal(keys[1], (width, 3 * width), jnp.float32),
            "bqkv": 0.02 * jax.random.normal(keys[2], (1, 3 * width), jnp.float32),
            "wattn": 0.02 * jax.random.normal(keys[3], (width, width), jnp.float32),
            "battn": jnp.zeros((1, width), jnp.float32),
            "ln2_g": jnp.ones((1, width), jnp.float32),
            "ln2_b": jnp.zeros((1, width), jnp.float32),
            "wfc": 0.02 * jax.random.normal(keys[4], (width, 4 * width), jnp.float32),
            "bfc": 0.02 * jax.random.normal(keys[5], (1, 4 * width), jnp.float32),
            "wmlp": 0.02 * jax.random.normal(keys[6], (4 * width, width), jnp.float32),
            "bmlp": jnp.zeros((1, width), jnp.float32),
        }
        params.append(p)
    return params


def pack_transformer_params(params, heads, weight_dtype=jnp.bfloat16):
    """Stack per-layer params into (layers, ...) arrays; permute wqkv/bqkv
    columns to contiguous [Q|K|V] slabs (head-major within each slab); fold
    the 1/sqrt(sqrt(head_dim)) attention scale into the Q and K slabs; cast
    matmul weights to bf16."""
    W = params[0]["wqkv"].shape[0]
    C = W // heads
    perm = np.arange(3 * W).reshape(heads, 3, C).transpose(1, 0, 2).reshape(-1)
    scale = 1.0 / math.sqrt(math.sqrt(C))
    qk_scale = jnp.asarray(
        np.concatenate([np.full(2 * W, scale, np.float32),
                        np.ones(W, np.float32)])[None, :])          # (1, 3W)

    def stack(name, dtype=jnp.float32):
        return jnp.stack([p[name] for p in params], axis=0).astype(dtype)

    wqkv = jnp.stack([p["wqkv"][:, perm] * qk_scale for p in params],
                     axis=0).astype(weight_dtype)
    bqkv = jnp.stack([p["bqkv"][:, perm] * qk_scale for p in params],
                     axis=0).astype(jnp.float32)

    return dict(
        ln1_g=stack("ln1_g"), ln1_b=stack("ln1_b"),
        wqkv=wqkv, bqkv=bqkv,
        wattn=stack("wattn", weight_dtype), battn=stack("battn"),
        ln2_g=stack("ln2_g"), ln2_b=stack("ln2_b"),
        wfc=stack("wfc", weight_dtype), bfc=stack("bfc"),
        wmlp=stack("wmlp", weight_dtype), bmlp=stack("bmlp"),
    )


def transformer_forward(x, packed, heads, layers, batch_blocks=None):
    B, T, W = x.shape
    call = make_transformer_call(B, T, W, layers, heads, x.dtype, batch_blocks)
    return call(x,
                packed["ln1_g"], packed["ln1_b"],
                packed["wqkv"], packed["bqkv"],
                packed["wattn"], packed["battn"],
                packed["ln2_g"], packed["ln2_b"],
                packed["wfc"], packed["bfc"],
                packed["wmlp"], packed["bmlp"])


# ---------------- pure-JAX reference (mirrors the PyTorch module) ------------
def _ref_block(x, p, heads):
    W = x.shape[-1]
    attn_ch = W // heads
    scale = 1.0 / math.sqrt(math.sqrt(attn_ch))

    def ln(v, g, b):
        mu = jnp.mean(v, axis=-1, keepdims=True)
        var = jnp.mean((v - mu) ** 2, axis=-1, keepdims=True)
        return (v - mu) / jnp.sqrt(var + 1e-5) * g + b

    h = ln(x, p["ln1_g"], p["ln1_b"])
    qkv = h @ p["wqkv"] + p["bqkv"]                       # (B, T, 3W)
    B, T, _ = qkv.shape
    qkv = qkv.reshape(B, T, heads, 3 * attn_ch)
    q, k, v = jnp.split(qkv, 3, axis=-1)
    w = jnp.einsum("bthc,bshc->bhts", q * scale, k * scale)
    w = jax.nn.softmax(w, axis=-1)
    a = jnp.einsum("bhts,bshc->bthc", w, v).reshape(B, T, W)
    x = x + (a @ p["wattn"] + p["battn"])

    h2 = ln(x, p["ln2_g"], p["ln2_b"])
    fc = h2 @ p["wfc"] + p["bfc"]
    fc = 0.5 * fc * (1.0 + jax.lax.erf(fc / jnp.sqrt(2.0)))
    return x + (fc @ p["wmlp"] + p["bmlp"])


def transformer_reference(x, params, heads):
    for p in params:
        x = _ref_block(x, p, heads)
    return x


if __name__ == "__main__":
    B, n_ctx, width, heads, layers = 2, 8, 32, 4, 2

    key = jax.random.PRNGKey(0)
    kx, kp = jax.random.split(key)
    x = jax.random.normal(kx, (B, n_ctx, width), jnp.float32)
    params = init_transformer_params(kp, width, layers)
    packed = pack_transformer_params(params, heads)

    out = transformer_forward(x, packed, heads, layers)
    out = jax.block_until_ready(out)

    ref = transformer_reference(x, params, heads)
    assert out.shape == (B, n_ctx, width)
    # bf16 matmul operands with fp32 accumulation -> looser tolerance than fp32.
    assert jnp.allclose(out, ref, rtol=2e-2, atol=2e-2), (
        f"max abs err {float(jnp.max(jnp.abs(out - ref)))}")

    print("KERNEL_OK")
</pallas_src>

<mosaic_0001>
module attributes {stable_mosaic.version = 11 : i64} {
  func.func @resblock_kernel(%arg0: i32, %arg1: i32, %arg2: memref<1x8x32xf32, #tpu.memory_space<vmem>>, %arg3: memref<1x1x32xf32, #tpu.memory_space<vmem>>, %arg4: memref<1x1x32xf32, #tpu.memory_space<vmem>>, %arg5: memref<1x32x96xbf16, #tpu.memory_space<vmem>>, %arg6: memref<1x1x96xf32, #tpu.memory_space<vmem>>, %arg7: memref<1x32x32xbf16, #tpu.memory_space<vmem>>, %arg8: memref<1x1x32xf32, #tpu.memory_space<vmem>>, %arg9: memref<1x1x32xf32, #tpu.memory_space<vmem>>, %arg10: memref<1x1x32xf32, #tpu.memory_space<vmem>>, %arg11: memref<1x32x128xbf16, #tpu.memory_space<vmem>>, %arg12: memref<1x1x128xf32, #tpu.memory_space<vmem>>, %arg13: memref<1x128x32xbf16, #tpu.memory_space<vmem>>, %arg14: memref<1x1x32xf32, #tpu.memory_space<vmem>>, %arg15: memref<1x8x32xf32, #tpu.memory_space<vmem>>) attributes {dimension_semantics = [#tpu.dimension_semantics<parallel>, #tpu.dimension_semantics<arbitrary>], iteration_bounds = array<i64: 2, 2>, scalar_prefetch = 0 : i64, scratch_operands = 0 : i64, tpu.core_type = #tpu.core_type<tc>, window_params = [{transform_indices = @transform_0, window_bounds = array<i64: 1, 8, 32>}, {transform_indices = @transform_1, window_bounds = array<i64: 1, 1, 32>}, {transform_indices = @transform_2, window_bounds = array<i64: 1, 1, 32>}, {transform_indices = @transform_3, window_bounds = array<i64: 1, 32, 96>}, {transform_indices = @transform_4, window_bounds = array<i64: 1, 1, 96>}, {transform_indices = @transform_5, window_bounds = array<i64: 1, 32, 32>}, {transform_indices = @transform_6, window_bounds = array<i64: 1, 1, 32>}, {transform_indices = @transform_7, window_bounds = array<i64: 1, 1, 32>}, {transform_indices = @transform_8, window_bounds = array<i64: 1, 1, 32>}, {transform_indices = @transform_9, window_bounds = array<i64: 1, 32, 128>}, {transform_indices = @transform_10, window_bounds = array<i64: 1, 1, 128>}, {transform_indices = @transform_11, window_bounds = array<i64: 1, 128, 32>}, {transform_indices = @transform_12, window_bounds = array<i64: 1, 1, 32>}, {transform_indices = @transform_13, window_bounds = array<i64: 1, 8, 32>}]} {
    %c0_i32 = arith.constant 0 : i32
    %0 = arith.cmpi eq, %arg1, %c0_i32 : i32
    %1 = arith.extui %0 : i1 to i32
    %c0_i32_0 = arith.constant 0 : i32
    %2 = arith.cmpi ne, %1, %c0_i32_0 : i32
    scf.if %2 {
      %c0_78 = arith.constant 0 : index
      %c0_79 = arith.constant 0 : index
      %c0_80 = arith.constant 0 : index
      %189 = vector.load %arg2[%c0_78, %c0_79, %c0_80] : memref<1x8x32xf32, #tpu.memory_space<vmem>>, vector<1x8x32xf32>
      %c0_81 = arith.constant 0 : index
      %c0_82 = arith.constant 0 : index
      %c0_83 = arith.constant 0 : index
      %190 = vector.load %arg15[%c0_81, %c0_82, %c0_83] : memref<1x8x32xf32, #tpu.memory_space<vmem>>, vector<1x8x32xf32>
      tpu.vector_store %arg15[%c0_81, %c0_82, %c0_83], %189 {strides = array<i32>} : memref<1x8x32xf32, #tpu.memory_space<vmem>>, vector<1x8x32xf32>,
    } else {
    }
    %c0 = arith.constant 0 : index
    %c0_1 = arith.constant 0 : index
    %c0_2 = arith.constant 0 : index
    %3 = vector.load %arg15[%c0, %c0_1, %c0_2] : memref<1x8x32xf32, #tpu.memory_space<vmem>>, vector<1x8x32xf32>
    %4 = vector.shape_cast %3 : vector<1x8x32xf32> to vector<8x32xf32>
    %c0_3 = arith.constant 0 : index
    %c0_4 = arith.constant 0 : index
    %c0_5 = arith.constant 0 : index
    %5 = vector.load %arg3[%c0_3, %c0_4, %c0_5] : memref<1x1x32xf32, #tpu.memory_space<vmem>>, vector<1x1x32xf32>
    %6 = vector.shape_cast %5 : vector<1x1x32xf32> to vector<1x32xf32>
    %c0_6 = arith.constant 0 : index
    %c0_7 = arith.constant 0 : index
    %c0_8 = arith.constant 0 : index
    %7 = vector.load %arg4[%c0_6, %c0_7, %c0_8] : memref<1x1x32xf32, #tpu.memory_space<vmem>>, vector<1x1x32xf32>
    %8 = vector.shape_cast %7 : vector<1x1x32xf32> to vector<1x32xf32>
    %cst = arith.constant dense<0.000000e+00> : vector<8xf32>
    %9 = vector.multi_reduction <add>, %4, %cst [1] : vector<8x32xf32> to vector<8xf32>
    %10 = vector.shape_cast %9 : vector<8xf32> to vector<8x1xf32>
    %cst_9 = arith.constant 3.200000e+01 : f32
    %11 = vector.broadcast %cst_9 : f32 to vector<8x1xf32>
    %12 = arith.divf %10, %11 : vector<8x1xf32>
    %13 = vector.broadcast %12 : vector<8x1xf32> to vector<8x32xf32>
    %14 = arith.subf %4, %13 : vector<8x32xf32>
    %15 = arith.mulf %14, %14 : vector<8x32xf32>
    %cst_10 = arith.constant dense<0.000000e+00> : vector<8xf32>
    %16 = vector.multi_reduction <add>, %15, %cst_10 [1] : vector<8x32xf32> to vector<8xf32>
    %17 = vector.shape_cast %16 : vector<8xf32> to vector<8x1xf32>
    %cst_11 = arith.constant 3.200000e+01 : f32
    %18 = vector.broadcast %cst_11 : f32 to vector<8x1xf32>
    %19 = arith.divf %17, %18 : vector<8x1xf32>
    %cst_12 = arith.constant 9.99999974E-6 : f32
    %20 = vector.broadcast %cst_12 : f32 to vector<8x1xf32>
    %21 = arith.addf %19, %20 : vector<8x1xf32>
    %22 = math.rsqrt %21 : vector<8x1xf32>
    %23 = vector.broadcast %22 : vector<8x1xf32> to vector<8x32xf32>
    %24 = arith.mulf %14, %23 : vector<8x32xf32>
    %25 = vector.broadcast %6 : vector<1x32xf32> to vector<8x32xf32>
    %26 = arith.mulf %24, %25 : vector<8x32xf32>
    %27 = vector.broadcast %8 : vector<1x32xf32> to vector<8x32xf32>
    %28 = arith.addf %26, %27 : vector<8x32xf32>
    %29 = arith.truncf %28 : vector<8x32xf32> to vector<8x32xbf16>
    %c0_13 = arith.constant 0 : index
    %c0_14 = arith.constant 0 : index
    %c0_15 = arith.constant 0 : index
    %30 = vector.load %arg5[%c0_13, %c0_14, %c0_15] : memref<1x32x96xbf16, #tpu.memory_space<vmem>>, vector<1x32x96xbf16>
    %31 = vector.shape_cast %30 : vector<1x32x96xbf16> to vector<32x96xbf16>
    %cst_16 = arith.constant dense<0.000000e+00> : vector<8x96xf32>
    %32 = tpu.matmul %29, %31, %cst_16 {dimension_numbers = #tpu.dot_dimension_numbers<[1], [0], [0], [1], [0, 0, 1, 1], [], []>} : vector<8x32xbf16>, vector<32x96xbf16>, vector<8x96xf32> -> vector<8x96xf32>
    %c0_17 = arith.constant 0 : index
    %c0_18 = arith.constant 0 : index
    %c0_19 = arith.constant 0 : index
    %33 = vector.load %arg6[%c0_17, %c0_18, %c0_19] : memref<1x1x96xf32, #tpu.memory_space<vmem>>, vector<1x1x96xf32>
    %34 = vector.shape_cast %33 : vector<1x1x96xf32> to vector<1x96xf32>
    %35 = vector.broadcast %34 : vector<1x96xf32> to vector<8x96xf32>
    %36 = arith.addf %32, %35 : vector<8x96xf32>
    %37 = vector.extract_strided_slice %36 {offsets = [0, 0], sizes = [8, 32], strides = [1, 1]} : vector<8x96xf32> to vector<8x32xf32>
    %38 = arith.truncf %37 : vector<8x32xf32> to vector<8x32xbf16>
    %39 = vector.shape_cast %38 : vector<8x32xbf16> to vector<1x8x32xbf16>
    %40 = vector.extract_strided_slice %36 {offsets = [0, 32], sizes = [8, 32], strides = [1, 1]} : vector<8x96xf32> to vector<8x32xf32>
    %41 = arith.truncf %40 : vector<8x32xf32> to vector<8x32xbf16>
    %42 = vector.shape_cast %41 : vector<8x32xbf16> to vector<1x8x32xbf16>
    %43 = vector.extract_strided_slice %36 {offsets = [0, 64], sizes = [8, 32], strides = [1, 1]} : vector<8x96xf32> to vector<8x32xf32>
    %44 = arith.truncf %43 : vector<8x32xf32> to vector<8x32xbf16>
    %45 = vector.shape_cast %44 : vector<8x32xbf16> to vector<1x8x32xbf16>
    %c0_20 = arith.constant 0 : index
    %c0_21 = arith.constant 0 : index
    %c0_22 = arith.constant 0 : index
    %46 = vector.load %arg7[%c0_20, %c0_21, %c0_22] : memref<1x32x32xbf16, #tpu.memory_space<vmem>>, vector<1x32x32xbf16>
    %47 = vector.shape_cast %46 : vector<1x32x32xbf16> to vector<32x32xbf16>
    %cst_23 = arith.constant 0.000000e+00 : f32
    %48 = vector.broadcast %cst_23 : f32 to vector<8x32xf32>
    %49 = vector.extract_strided_slice %39 {offsets = [0, 0, 0], sizes = [1, 8, 8], strides = [1, 1, 1]} : vector<1x8x32xbf16> to vector<1x8x8xbf16>
    %50 = vector.extract_strided_slice %42 {offsets = [0, 0, 0], sizes = [1, 8, 8], strides = [1, 1, 1]} : vector<1x8x32xbf16> to vector<1x8x8xbf16>
    "tpu.trace_start"() <{level = 10 : i32, message = "bqc,bkc->bqk"}> : () -> ()
    %cst_24 = arith.constant dense<0.000000e+00> : vector<1x8x8xf32>
    %51 = tpu.matmul %49, %50, %cst_24 {dimension_numbers = #tpu.dot_dimension_numbers<[2], [2], [1], [1], [0, 0, 0, 1, 1, 1], [0], [0]>} : vector<1x8x8xbf16>, vector<1x8x8xbf16>, vector<1x8x8xf32> -> vector<1x8x8xf32>
    "tpu.trace_stop"() : () -> ()
    %cst_25 = arith.constant dense<0xFF800000> : vector<1x8xf32>
    %52 = vector.multi_reduction <maximumf>, %51, %cst_25 [2] : vector<1x8x8xf32> to vector<1x8xf32>
    %53 = vector.shape_cast %52 : vector<1x8xf32> to vector<1x8x1xf32>
    %54 = vector.broadcast %53 : vector<1x8x1xf32> to vector<1x8x8xf32>
    %55 = arith.subf %51, %54 : vector<1x8x8xf32>
    %56 = math.exp %55 : vector<1x8x8xf32>
    %cst_26 = arith.constant dense<0.000000e+00> : vector<1x8xf32>
    %57 = vector.multi_reduction <add>, %56, %cst_26 [2] : vector<1x8x8xf32> to vector<1x8xf32>
    %58 = vector.shape_cast %57 : vector<1x8xf32> to vector<1x8x1xf32>
    %59 = tpu.reciprocal %58 {approx = true} : vector<1x8x1xf32> -> vector<1x8x1xf32>
    %60 = arith.truncf %56 : vector<1x8x8xf32> to vector<1x8x8xbf16>
    %61 = vector.extract_strided_slice %45 {offsets = [0, 0, 0], sizes = [1, 8, 8], strides = [1, 1, 1]} : vector<1x8x32xbf16> to vector<1x8x8xbf16>
    "tpu.trace_start"() <{level = 10 : i32, message = "bqk,bkc->bqc"}> : () -> ()
    %cst_27 = arith.constant dense<0.000000e+00> : vector<1x8x8xf32>
    %62 = tpu.matmul %60, %61, %cst_27 {dimension_numbers = #tpu.dot_dimension_numbers<[2], [1], [1], [2], [0, 0, 0, 1, 1, 2], [0], [0]>} : vector<1x8x8xbf16>, vector<1x8x8xbf16>, vector<1x8x8xf32> -> vector<1x8x8xf32>
    "tpu.trace_stop"() : () -> ()
    %63 = vector.broadcast %59 : vector<1x8x1xf32> to vector<1x8x8xf32>
    %64 = arith.mulf %62, %63 : vector<1x8x8xf32>
    %65 = arith.truncf %64 : vector<1x8x8xf32> to vector<1x8x8xbf16>
    %66 = vector.shape_cast %65 : vector<1x8x8xbf16> to vector<8x8xbf16>
    %67 = vector.extract_strided_slice %47 {offsets = [0, 0], sizes = [8, 32], strides = [1, 1]} : vector<32x32xbf16> to vector<8x32xbf16>
    %cst_28 = arith.constant dense<0.000000e+00> : vector<8x32xf32>
    %68 = tpu.matmul %66, %67, %cst_28 {dimension_numbers = #tpu.dot_dimension_numbers<[1], [0], [0], [1], [0, 0, 1, 1], [], []>} : vector<8x8xbf16>, vector<8x32xbf16>, vector<8x32xf32> -> vector<8x32xf32>
    %69 = arith.addf %48, %68 : vector<8x32xf32>
    %70 = vector.extract_strided_slice %39 {offsets = [0, 0, 8], sizes = [1, 8, 8], strides = [1, 1, 1]} : vector<1x8x32xbf16> to vector<1x8x8xbf16>
    %71 = vector.extract_strided_slice %42 {offsets = [0, 0, 8], sizes = [1, 8, 8], strides = [1, 1, 1]} : vector<1x8x32xbf16> to vector<1x8x8xbf16>
    "tpu.trace_start"() <{level = 10 : i32, message = "bqc,bkc->bqk"}> : () -> ()
    %cst_29 = arith.constant dense<0.000000e+00> : vector<1x8x8xf32>
    %72 = tpu.matmul %70, %71, %cst_29 {dimension_numbers = #tpu.dot_dimension_numbers<[2], [2], [1], [1], [0, 0, 0, 1, 1, 1], [0], [0]>} : vector<1x8x8xbf16>, vector<1x8x8xbf16>, vector<1x8x8xf32> -> vector<1x8x8xf32>
    "tpu.trace_stop"() : () -> ()
    %cst_30 = arith.constant dense<0xFF800000> : vector<1x8xf32>
    %73 = vector.multi_reduction <maximumf>, %72, %cst_30 [2] : vector<1x8x8xf32> to vector<1x8xf32>
    %74 = vector.shape_cast %73 : vector<1x8xf32> to vector<1x8x1xf32>
    %75 = vector.broadcast %74 : vector<1x8x1xf32> to vector<1x8x8xf32>
    %76 = arith.subf %72, %75 : vector<1x8x8xf32>
    %77 = math.exp %76 : vector<1x8x8xf32>
    %cst_31 = arith.constant dense<0.000000e+00> : vector<1x8xf32>
    %78 = vector.multi_reduction <add>, %77, %cst_31 [2] : vector<1x8x8xf32> to vector<1x8xf32>
    %79 = vector.shape_cast %78 : vector<1x8xf32> to vector<1x8x1xf32>
    %80 = tpu.reciprocal %79 {approx = true} : vector<1x8x1xf32> -> vector<1x8x1xf32>
    %81 = arith.truncf %77 : vector<1x8x8xf32> to vector<1x8x8xbf16>
    %82 = vector.extract_strided_slice %45 {offsets = [0, 0, 8], sizes = [1, 8, 8], strides = [1, 1, 1]} : vector<1x8x32xbf16> to vector<1x8x8xbf16>
    "tpu.trace_start"() <{level = 10 : i32, message = "bqk,bkc->bqc"}> : () -> ()
    %cst_32 = arith.constant dense<0.000000e+00> : vector<1x8x8xf32>
    %83 = tpu.matmul %81, %82, %cst_32 {dimension_numbers = #tpu.dot_dimension_numbers<[2], [1], [1], [2], [0, 0, 0, 1, 1, 2], [0], [0]>} : vector<1x8x8xbf16>, vector<1x8x8xbf16>, vector<1x8x8xf32> -> vector<1x8x8xf32>
    "tpu.trace_stop"() : () -> ()
    %84 = vector.broadcast %80 : vector<1x8x1xf32> to vector<1x8x8xf32>
    %85 = arith.mulf %83, %84 : vector<1x8x8xf32>
    %86 = arith.truncf %85 : vector<1x8x8xf32> to vector<1x8x8xbf16>
    %87 = vector.shape_cast %86 : vector<1x8x8xbf16> to vector<8x8xbf16>
    %88 = vector.extract_strided_slice %47 {offsets = [8, 0], sizes = [8, 32], strides = [1, 1]} : vector<32x32xbf16> to vector<8x32xbf16>
    %cst_33 = arith.constant dense<0.000000e+00> : vector<8x32xf32>
    %89 = tpu.matmul %87, %88, %cst_33 {dimension_numbers = #tpu.dot_dimension_numbers<[1], [0], [0], [1], [0, 0, 1, 1], [], []>} : vector<8x8xbf16>, vector<8x32xbf16>, vector<8x32xf32> -> vector<8x32xf32>
    %90 = arith.addf %69, %89 : vector<8x32xf32>
    %91 = vector.extract_strided_slice %39 {offsets = [0, 0, 16], sizes = [1, 8, 8], strides = [1, 1, 1]} : vector<1x8x32xbf16> to vector<1x8x8xbf16>
    %92 = vector.extract_strided_slice %42 {offsets = [0, 0, 16], sizes = [1, 8, 8], strides = [1, 1, 1]} : vector<1x8x32xbf16> to vector<1x8x8xbf16>
    "tpu.trace_start"() <{level = 10 : i32, message = "bqc,bkc->bqk"}> : () -> ()
    %cst_34 = arith.constant dense<0.000000e+00> : vector<1x8x8xf32>
    %93 = tpu.matmul %91, %92, %cst_34 {dimension_numbers = #tpu.dot_dimension_numbers<[2], [2], [1], [1], [0, 0, 0, 1, 1, 1], [0], [0]>} : vector<1x8x8xbf16>, vector<1x8x8xbf16>, vector<1x8x8xf32> -> vector<1x8x8xf32>
    "tpu.trace_stop"() : () -> ()
    %cst_35 = arith.constant dense<0xFF800000> : vector<1x8xf32>
    %94 = vector.multi_reduction <maximumf>, %93, %cst_35 [2] : vector<1x8x8xf32> to vector<1x8xf32>
    %95 = vector.shape_cast %94 : vector<1x8xf32> to vector<1x8x1xf32>
    %96 = vector.broadcast %95 : vector<1x8x1xf32> to vector<1x8x8xf32>
    %97 = arith.subf %93, %96 : vector<1x8x8xf32>
    %98 = math.exp %97 : vector<1x8x8xf32>
    %cst_36 = arith.constant dense<0.000000e+00> : vector<1x8xf32>
    %99 = vector.multi_reduction <add>, %98, %cst_36 [2] : vector<1x8x8xf32> to vector<1x8xf32>
    %100 = vector.shape_cast %99 : vector<1x8xf32> to vector<1x8x1xf32>
    %101 = tpu.reciprocal %100 {approx = true} : vector<1x8x1xf32> -> vector<1x8x1xf32>
    %102 = arith.truncf %98 : vector<1x8x8xf32> to vector<1x8x8xbf16>
    %103 = vector.extract_strided_slice %45 {offsets = [0, 0, 16], sizes = [1, 8, 8], strides = [1, 1, 1]} : vector<1x8x32xbf16> to vector<1x8x8xbf16>
    "tpu.trace_start"() <{level = 10 : i32, message = "bqk,bkc->bqc"}> : () -> ()
    %cst_37 = arith.constant dense<0.000000e+00> : vector<1x8x8xf32>
    %104 = tpu.matmul %102, %103, %cst_37 {dimension_numbers = #tpu.dot_dimension_numbers<[2], [1], [1], [2], [0, 0, 0, 1, 1, 2], [0], [0]>} : vector<1x8x8xbf16>, vector<1x8x8xbf16>, vector<1x8x8xf32> -> vector<1x8x8xf32>
    "tpu.trace_stop"() : () -> ()
    %105 = vector.broadcast %101 : vector<1x8x1xf32> to vector<1x8x8xf32>
    %106 = arith.mulf %104, %105 : vector<1x8x8xf32>
    %107 = arith.truncf %106 : vector<1x8x8xf32> to vector<1x8x8xbf16>
    %108 = vector.shape_cast %107 : vector<1x8x8xbf16> to vector<8x8xbf16>
    %109 = vector.extract_strided_slice %47 {offsets = [16, 0], sizes = [8, 32], strides = [1, 1]} : vector<32x32xbf16> to vector<8x32xbf16>
    %cst_38 = arith.constant dense<0.000000e+00> : vector<8x32xf32>
    %110 = tpu.matmul %108, %109, %cst_38 {dimension_numbers = #tpu.dot_dimension_numbers<[1], [0], [0], [1], [0, 0, 1, 1], [], []>} : vector<8x8xbf16>, vector<8x32xbf16>, vector<8x32xf32> -> vector<8x32xf32>
    %111 = arith.addf %90, %110 : vector<8x32xf32>
    %112 = vector.extract_strided_slice %39 {offsets = [0, 0, 24], sizes = [1, 8, 8], strides = [1, 1, 1]} : vector<1x8x32xbf16> to vector<1x8x8xbf16>
    %113 = vector.extract_strided_slice %42 {offsets = [0, 0, 24], sizes = [1, 8, 8], strides = [1, 1, 1]} : vector<1x8x32xbf16> to vector<1x8x8xbf16>
    "tpu.trace_start"() <{level = 10 : i32, message = "bqc,bkc->bqk"}> : () -> ()
    %cst_39 = arith.constant dense<0.000000e+00> : vector<1x8x8xf32>
    %114 = tpu.matmul %112, %113, %cst_39 {dimension_numbers = #tpu.dot_dimension_numbers<[2], [2], [1], [1], [0, 0, 0, 1, 1, 1], [0], [0]>} : vector<1x8x8xbf16>, vector<1x8x8xbf16>, vector<1x8x8xf32> -> vector<1x8x8xf32>
    "tpu.trace_stop"() : () -> ()
    %cst_40 = arith.constant dense<0xFF800000> : vector<1x8xf32>
    %115 = vector.multi_reduction <maximumf>, %114, %cst_40 [2] : vector<1x8x8xf32> to vector<1x8xf32>
    %116 = vector.shape_cast %115 : vector<1x8xf32> to vector<1x8x1xf32>
    %117 = vector.broadcast %116 : vector<1x8x1xf32> to vector<1x8x8xf32>
    %118 = arith.subf %114, %117 : vector<1x8x8xf32>
    %119 = math.exp %118 : vector<1x8x8xf32>
    %cst_41 = arith.constant dense<0.000000e+00> : vector<1x8xf32>
    %120 = vector.multi_reduction <add>, %119, %cst_41 [2] : vector<1x8x8xf32> to vector<1x8xf32>
    %121 = vector.shape_cast %120 : vector<1x8xf32> to vector<1x8x1xf32>
    %122 = tpu.reciprocal %121 {approx = true} : vector<1x8x1xf32> -> vector<1x8x1xf32>
    %123 = arith.truncf %119 : vector<1x8x8xf32> to vector<1x8x8xbf16>
    %124 = vector.extract_strided_slice %45 {offsets = [0, 0, 24], sizes = [1, 8, 8], strides = [1, 1, 1]} : vector<1x8x32xbf16> to vector<1x8x8xbf16>
    "tpu.trace_start"() <{level = 10 : i32, message = "bqk,bkc->bqc"}> : () -> ()
    %cst_42 = arith.constant dense<0.000000e+00> : vector<1x8x8xf32>
    %125 = tpu.matmul %123, %124, %cst_42 {dimension_numbers = #tpu.dot_dimension_numbers<[2], [1], [1], [2], [0, 0, 0, 1, 1, 2], [0], [0]>} : vector<1x8x8xbf16>, vector<1x8x8xbf16>, vector<1x8x8xf32> -> vector<1x8x8xf32>
    "tpu.trace_stop"() : () -> ()
    %126 = vector.broadcast %122 : vector<1x8x1xf32> to vector<1x8x8xf32>
    %127 = arith.mulf %125, %126 : vector<1x8x8xf32>
    %128 = arith.truncf %127 : vector<1x8x8xf32> to vector<1x8x8xbf16>
    %129 = vector.shape_cast %128 : vector<1x8x8xbf16> to vector<8x8xbf16>
    %130 = vector.extract_strided_slice %47 {offsets = [24, 0], sizes = [8, 32], strides = [1, 1]} : vector<32x32xbf16> to vector<8x32xbf16>
    %cst_43 = arith.constant dense<0.000000e+00> : vector<8x32xf32>
    %131 = tpu.matmul %129, %130, %cst_43 {dimension_numbers = #tpu.dot_dimension_numbers<[1], [0], [0], [1], [0, 0, 1, 1], [], []>} : vector<8x8xbf16>, vector<8x32xbf16>, vector<8x32xf32> -> vector<8x32xf32>
    %132 = arith.addf %111, %131 : vector<8x32xf32>
    %133 = arith.addf %4, %132 : vector<8x32xf32>
    %c0_44 = arith.constant 0 : index
    %c0_45 = arith.constant 0 : index
    %c0_46 = arith.constant 0 : index
    %134 = vector.load %arg8[%c0_44, %c0_45, %c0_46] : memref<1x1x32xf32, #tpu.memory_space<vmem>>, vector<1x1x32xf32>
    %135 = vector.shape_cast %134 : vector<1x1x32xf32> to vector<1x32xf32>
    %136 = vector.broadcast %135 : vector<1x32xf32> to vector<8x32xf32>
    %137 = arith.addf %133, %136 : vector<8x32xf32>
    %c0_47 = arith.constant 0 : index
    %c0_48 = arith.constant 0 : index
    %c0_49 = arith.constant 0 : index
    %138 = vector.load %arg9[%c0_47, %c0_48, %c0_49] : memref<1x1x32xf32, #tpu.memory_space<vmem>>, vector<1x1x32xf32>
    %139 = vector.shape_cast %138 : vector<1x1x32xf32> to vector<1x32xf32>
    %c0_50 = arith.constant 0 : index
    %c0_51 = arith.constant 0 : index
    %c0_52 = arith.constant 0 : index
    %140 = vector.load %arg10[%c0_50, %c0_51, %c0_52] : memref<1x1x32xf32, #tpu.memory_space<vmem>>, vector<1x1x32xf32>
    %141 = vector.shape_cast %140 : vector<1x1x32xf32> to vector<1x32xf32>
    %cst_53 = arith.constant dense<0.000000e+00> : vector<8xf32>
    %142 = vector.multi_reduction <add>, %137, %cst_53 [1] : vector<8x32xf32> to vector<8xf32>
    %143 = vector.shape_cast %142 : vector<8xf32> to vector<8x1xf32>
    %cst_54 = arith.constant 3.200000e+01 : f32
    %144 = vector.broadcast %cst_54 : f32 to vector<8x1xf32>
    %145 = arith.divf %143, %144 : vector<8x1xf32>
    %146 = vector.broadcast %145 : vector<8x1xf32> to vector<8x32xf32>
    %147 = arith.subf %137, %146 : vector<8x32xf32>
    %148 = arith.mulf %147, %147 : vector<8x32xf32>
    %cst_55 = arith.constant dense<0.000000e+00> : vector<8xf32>
    %149 = vector.multi_reduction <add>, %148, %cst_55 [1] : vector<8x32xf32> to vector<8xf32>
    %150 = vector.shape_cast %149 : vector<8xf32> to vector<8x1xf32>
    %cst_56 = arith.constant 3.200000e+01 : f32
    %151 = vector.broadcast %cst_56 : f32 to vector<8x1xf32>
    %152 = arith.divf %150, %151 : vector<8x1xf32>
    %cst_57 = arith.constant 9.99999974E-6 : f32
    %153 = vector.broadcast %cst_57 : f32 to vector<8x1xf32>
    %154 = arith.addf %152, %153 : vector<8x1xf32>
    %155 = math.rsqrt %154 : vector<8x1xf32>
    %156 = vector.broadcast %155 : vector<8x1xf32> to vector<8x32xf32>
    %157 = arith.mulf %147, %156 : vector<8x32xf32>
    %158 = vector.broadcast %139 : vector<1x32xf32> to vector<8x32xf32>
    %159 = arith.mulf %157, %158 : vector<8x32xf32>
    %160 = vector.broadcast %141 : vector<1x32xf32> to vector<8x32xf32>
    %161 = arith.addf %159, %160 : vector<8x32xf32>
    %162 = arith.truncf %161 : vector<8x32xf32> to vector<8x32xbf16>
    %c0_58 = arith.constant 0 : index
    %c0_59 = arith.constant 0 : index
    %c0_60 = arith.constant 0 : index
    %163 = vector.load %arg11[%c0_58, %c0_59, %c0_60] : memref<1x32x128xbf16, #tpu.memory_space<vmem>>, vector<1x32x128xbf16>
    %164 = vector.shape_cast %163 : vector<1x32x128xbf16> to vector<32x128xbf16>
    %cst_61 = arith.constant dense<0.000000e+00> : vector<8x128xf32>
    %165 = tpu.matmul %162, %164, %cst_61 {dimension_numbers = #tpu.dot_dimension_numbers<[1], [0], [0], [1], [0, 0, 1, 1], [], []>} : vector<8x32xbf16>, vector<32x128xbf16>, vector<8x128xf32> -> vector<8x128xf32>
    %c0_62 = arith.constant 0 : index
    %c0_63 = arith.constant 0 : index
    %c0_64 = arith.constant 0 : index
    %166 = vector.load %arg12[%c0_62, %c0_63, %c0_64] : memref<1x1x128xf32, #tpu.memory_space<vmem>>, vector<1x1x128xf32>
    %167 = vector.shape_cast %166 : vector<1x1x128xf32> to vector<1x128xf32>
    %168 = vector.broadcast %167 : vector<1x128xf32> to vector<8x128xf32>
    %169 = arith.addf %165, %168 : vector<8x128xf32>
    %cst_65 = arith.constant 5.000000e-01 : f32
    %170 = vector.broadcast %cst_65 : f32 to vector<8x128xf32>
    %171 = arith.mulf %170, %169 : vector<8x128xf32>
    %cst_66 = arith.constant 0.707106769 : f32
    %172 = vector.broadcast %cst_66 : f32 to vector<8x128xf32>
    %173 = arith.mulf %169, %172 : vector<8x128xf32>
    %174 = math.erf %173 : vector<8x128xf32>
    %cst_67 = arith.constant 1.000000e+00 : f32
    %175 = vector.broadcast %cst_67 : f32 to vector<8x128xf32>
    %176 = arith.addf %175, %174 : vector<8x128xf32>
    %177 = arith.mulf %171, %176 : vector<8x128xf32>
    %178 = arith.truncf %177 : vector<8x128xf32> to vector<8x128xbf16>
    %c0_68 = arith.constant 0 : index
    %c0_69 = arith.constant 0 : index
    %c0_70 = arith.constant 0 : index
    %179 = vector.load %arg13[%c0_68, %c0_69, %c0_70] : memref<1x128x32xbf16, #tpu.memory_space<vmem>>, vector<1x128x32xbf16>
    %180 = vector.shape_cast %179 : vector<1x128x32xbf16> to vector<128x32xbf16>
    %cst_71 = arith.constant dense<0.000000e+00> : vector<8x32xf32>
    %181 = tpu.matmul %178, %180, %cst_71 {dimension_numbers = #tpu.dot_dimension_numbers<[1], [0], [0], [1], [0, 0, 1, 1], [], []>} : vector<8x128xbf16>, vector<128x32xbf16>, vector<8x32xf32> -> vector<8x32xf32>
    %c0_72 = arith.constant 0 : index
    %c0_73 = arith.constant 0 : index
    %c0_74 = arith.constant 0 : index
    %182 = vector.load %arg14[%c0_72, %c0_73, %c0_74] : memref<1x1x32xf32, #tpu.memory_space<vmem>>, vector<1x1x32xf32>
    %183 = vector.shape_cast %182 : vector<1x1x32xf32> to vector<1x32xf32>
    %184 = vector.broadcast %183 : vector<1x32xf32> to vector<8x32xf32>
    %185 = arith.addf %181, %184 : vector<8x32xf32>
    %186 = arith.addf %137, %185 : vector<8x32xf32>
    %187 = vector.shape_cast %186 : vector<8x32xf32> to vector<1x8x32xf32>
    %c0_75 = arith.constant 0 : index
    %c0_76 = arith.constant 0 : index
    %c0_77 = arith.constant 0 : index
    %188 = vector.load %arg15[%c0_75, %c0_76, %c0_77] : memref<1x8x32xf32, #tpu.memory_space<vmem>>, vector<1x8x32xf32>
    tpu.vector_store %arg15[%c0_75, %c0_76, %c0_77], %187 {strides = array<i32>} : memref<1x8x32xf32, #tpu.memory_space<vmem>>, vector<1x8x32xf32>,
    return
  }
  func.func @transform_0(%arg0: i32, %arg1: i32) -> (i32, i32, i32) {
    %c0_i32 = arith.constant 0 : i32
    %c0_i32_0 = arith.constant 0 : i32
    %c0_i32_1 = arith.constant 0 : i32
    return %arg0, %c0_i32, %c0_i32_0 : i32, i32, i32
  }
  func.func @transform_1(%arg0: i32, %arg1: i32) -> (i32, i32, i32) {
    %c0_i32 = arith.constant 0 : i32
    %c0_i32_0 = arith.constant 0 : i32
    %c0_i32_1 = arith.constant 0 : i32
    return %arg1, %c0_i32, %c0_i32_0 : i32, i32, i32
  }
  func.func @transform_2(%arg0: i32, %arg1: i32) -> (i32, i32, i32) {
    %c0_i32 = arith.constant 0 : i32
    %c0_i32_0 = arith.constant 0 : i32
    %c0_i32_1 = arith.constant 0 : i32
    return %arg1, %c0_i32, %c0_i32_0 : i32, i32, i32
  }
  func.func @transform_3(%arg0: i32, %arg1: i32) -> (i32, i32, i32) {
    %c0_i32 = arith.constant 0 : i32
    %c0_i32_0 = arith.constant 0 : i32
    %c0_i32_1 = arith.constant 0 : i32
    return %arg1, %c0_i32, %c0_i32_0 : i32, i32, i32
  }
  func.func @transform_4(%arg0: i32, %arg1: i32) -> (i32, i32, i32) {
    %c0_i32 = arith.constant 0 : i32
    %c0_i32_0 = arith.constant 0 : i32
    %c0_i32_1 = arith.constant 0 : i32
    return %arg1, %c0_i32, %c0_i32_0 : i32, i32, i32
  }
  func.func @transform_5(%arg0: i32, %arg1: i32) -> (i32, i32, i32) {
    %c0_i32 = arith.constant 0 : i32
    %c0_i32_0 = arith.constant 0 : i32
    %c0_i32_1 = arith.constant 0 : i32
    return %arg1, %c0_i32, %c0_i32_0 : i32, i32, i32
  }
  func.func @transform_6(%arg0: i32, %arg1: i32) -> (i32, i32, i32) {
    %c0_i32 = arith.constant 0 : i32
    %c0_i32_0 = arith.constant 0 : i32
    %c0_i32_1 = arith.constant 0 : i32
    return %arg1, %c0_i32, %c0_i32_0 : i32, i32, i32
  }
  func.func @transform_7(%arg0: i32, %arg1: i32) -> (i32, i32, i32) {
    %c0_i32 = arith.constant 0 : i32
    %c0_i32_0 = arith.constant 0 : i32
    %c0_i32_1 = arith.constant 0 : i32
    return %arg1, %c0_i32, %c0_i32_0 : i32, i32, i32
  }
  func.func @transform_8(%arg0: i32, %arg1: i32) -> (i32, i32, i32) {
    %c0_i32 = arith.constant 0 : i32
    %c0_i32_0 = arith.constant 0 : i32
    %c0_i32_1 = arith.constant 0 : i32
    return %arg1, %c0_i32, %c0_i32_0 : i32, i32, i32
  }
  func.func @transform_9(%arg0: i32, %arg1: i32) -> (i32, i32, i32) {
    %c0_i32 = arith.constant 0 : i32
    %c0_i32_0 = arith.constant 0 : i32
    %c0_i32_1 = arith.constant 0 : i32
    return %arg1, %c0_i32, %c0_i32_0 : i32, i32, i32
  }
  func.func @transform_10(%arg0: i32, %arg1: i32) -> (i32, i32, i32) {
    %c0_i32 = arith.constant 0 : i32
    %c0_i32_0 = arith.constant 0 : i32
    %c0_i32_1 = arith.constant 0 : i32
    return %arg1, %c0_i32, %c0_i32_0 : i32, i32, i32
  }
  func.func @transform_11(%arg0: i32, %arg1: i32) -> (i32, i32, i32) {
    %c0_i32 = arith.constant 0 : i32
    %c0_i32_0 = arith.constant 0 : i32
    %c0_i32_1 = arith.constant 0 : i32
    return %arg1, %c0_i32, %c0_i32_0 : i32, i32, i32
  }
  func.func @transform_12(%arg0: i32, %arg1: i32) -> (i32, i32, i32) {
    %c0_i32 = arith.constant 0 : i32
    %c0_i32_0 = arith.constant 0 : i32
    %c0_i32_1 = arith.constant 0 : i32
    return %arg1, %c0_i32, %c0_i32_0 : i32, i32, i32
  }
  func.func @transform_13(%arg0: i32, %arg1: i32) -> (i32, i32, i32) {
    %c0_i32 = arith.constant 0 : i32
    %c0_i32_0 = arith.constant 0 : i32
    %c0_i32_1 = arith.constant 0 : i32
    return %arg0, %c0_i32, %c0_i32_0 : i32, i32, i32
  }
}

</mosaic_0001>

<llo_original>
// kernel: tpu_custom_call.1
$region0: #{tpu_custom_call.1}
  #allocation0 [shape = 'u32[]', space=smem, size = 0x4, offset = 0x4, fixed_abs, tag = 'smem constant byte address 0x4 - core index']
  #allocation1 [shape = 'u32[144,128]{1,0:T(1,128)}', space=vmem, size = 0x12000, scoped, tag = 'internal scratch']
  %s0 = inlined_call_operand.vmem [shape: f32[2,8,32], index: 0, kind: input, shape index: {}]
  %s1 = inlined_call_operand.vmem [shape: f32[2,1,32], index: 1, kind: input, shape index: {}]
  %s2 = inlined_call_operand.vmem [shape: f32[2,1,32], index: 2, kind: input, shape index: {}]
  %s3 = inlined_call_operand.vmem [shape: bf16[2,32,96], index: 3, kind: input, shape index: {}]
  %s4 = inlined_call_operand.vmem [shape: f32[2,1,96], index: 4, kind: input, shape index: {}]
  %s5 = inlined_call_operand.vmem [shape: bf16[2,32,32], index: 5, kind: input, shape index: {}]
  %s6 = inlined_call_operand.vmem [shape: f32[2,1,32], index: 6, kind: input, shape index: {}]
  %s7 = inlined_call_operand.vmem [shape: f32[2,1,32], index: 7, kind: input, shape index: {}]
  %s8 = inlined_call_operand.vmem [shape: f32[2,1,32], index: 8, kind: input, shape index: {}]
  %s9 = inlined_call_operand.vmem [shape: bf16[2,32,128], index: 9, kind: input, shape index: {}]
  %s10 = inlined_call_operand.vmem [shape: f32[2,1,128], index: 10, kind: input, shape index: {}]
  %s11 = inlined_call_operand.vmem [shape: bf16[2,128,32], index: 11, kind: input, shape index: {}]
  %s12 = inlined_call_operand.vmem [shape: f32[2,1,32], index: 12, kind: input, shape index: {}]
  %s13 = inlined_call_operand.hbm [shape: f32[2,8,32], index: 13, kind: output, shape index: {}]
  %s14 = sld [smem:[#allocation0]]
  $region89: #{tpu_custom_call.1} parent=0
    _
  %s16 = ssub.s32 1, %s14
  %s17 = scalar_select 0, %s16, %s14
  $region1: #{tpu_custom_call.1} parent=0
    #allocation2 [shape = 'u8[8192]{0}', space=vmem, size = 0x2000, scoped, tag = 'output window, operand 0']
    #allocation3 [shape = 's32[2]{0}', space=sflag, size = 0x8, scoped, tag = 'scoped memory for tpu_custom_call.1']
    %18 = vsyncpa [#allocation3], 0
    %s19 = scalar_lea.sflag [#allocation3], 1
    %20 = vsyncpa %s19, 0
    loop: start=0, step=1, limit=6
    $region2: #{tpu_custom_call.1} parent=1 // loop_pre_header
      _
    $region3: #{tpu_custom_call.1} parent=1 // loop_header
      %s22 = sphi 0, %s26
      %p23 = scmp.ge.s32.totalorder %s22, 6
      %s29 = sphi 0, %s41
      %s30 = sphi 0, %s37
      %s31 = sphi 0, %s29
      %s32 = sphi 0, %s30
      %s33 = sphi 0, %s31
      %s34 = sphi 0, %s32
      %s44 = sphi 0, %s46
      %s47 = sphi 0, %s44
      %s48 = sphi 0, %s47
      %s64 = sphi 0, %s48
      %s70 = sphi 0, %s72
      %s73 = sphi 0, %s70
      %s74 = sphi 0, %s73
      %s90 = sphi 0, %s74
      %s96 = sphi 0, %s98
      %s99 = sphi 0, %s96
      %s100 = sphi 0, %s99
      %s116 = sphi 0, %s100
      %s122 = sphi 0, %s124
      %s125 = sphi 0, %s122
      %s126 = sphi 0, %s125
      %s142 = sphi 0, %s126
      %s148 = sphi 0, %s150
      %s151 = sphi 0, %s148
      %s152 = sphi 0, %s151
      %s168 = sphi 0, %s152
      %s174 = sphi 0, %s176
      %s177 = sphi 0, %s174
      %s178 = sphi 0, %s177
      %s194 = sphi 0, %s178
      %s200 = sphi 0, %s202
      %s203 = sphi 0, %s200
      %s204 = sphi 0, %s203
      %s220 = sphi 0, %s204
      %s226 = sphi 0, %s228
      %s229 = sphi 0, %s226
      %s230 = sphi 0, %s229
      %s246 = sphi 0, %s230
      %s252 = sphi 0, %s254
      %s255 = sphi 0, %s252
      %s256 = sphi 0, %s255
      %s272 = sphi 0, %s256
      %s278 = sphi 0, %s280
      %s281 = sphi 0, %s278
      %s282 = sphi 0, %s281
      %s298 = sphi 0, %s282
      %s304 = sphi 0, %s306
      %s307 = sphi 0, %s304
      %s308 = sphi 0, %s307
      %s324 = sphi 0, %s308
      %s330 = sphi 0, %s332
      %s333 = sphi 0, %s330
      %s334 = sphi 0, %s333
      %s350 = sphi 0, %s334
      %s356 = sphi 0, %s358
      %s359 = sphi 0, %s356
      %s360 = sphi 0, %s359
      %s376 = sphi 0, %s360
      %s382 = sphi 0, %s384
      %s385 = sphi 0, %s382
      %s386 = sphi 0, %s385
      %s402 = sphi 0, %s386
    $region4: #{tpu_custom_call.1} parent=1 // loop_header_branch
      %25 = sbr.rel (%p23) target = $region8
    $region5: #{tpu_custom_call.1} parent=1 // loop_body
      %s27 = ssub.s32 %s22, 1
      %s28 = ssub.s32 %s22, 2
      %s35 = sadd.s32 1, %s30
      %p36 = scmp.ge.s32.totalorder %s35, 2
      %s37 = scalar_select %p36, 0, %s35
      %s38 = sadd.s32 1, %s29
      %s39 = scalar_select %p36, %s38, %s29
      %p40 = scmp.ge.s32.totalorder %s39, 2
      %s41 = scalar_select %p40, 0, %s39
      %s42 = ssub.s32 %s29, %s41
      %p43 = scmp.eq.s32.totalorder %s42, 0
      %s45 = sadd.s32 %s44, 1
      %s46 = scalar_select %p43, %s44, %s45
      %p49 = pneg %p43
      %p50 = scmp.eq.s32.totalorder %s22, 3
      %p51 = por %p49, %p50
      %p52 = scmp.ne.s32.totalorder %s44, %s47
      %p53 = scmp.eq.s32.totalorder %s22, 0
      %p54 = por %p52, %p53
      %p55 = scmp.ne.s32.totalorder %s44, %s47
      %p56 = scmp.eq.s32.totalorder %s27, 3
      %p57 = por %p55, %p56
      %p58 = scmp.ne.s32.totalorder %s47, %s48
      %p59 = scmp.eq.s32.totalorder %s27, 0
      %p60 = por %p58, %p59
      %p61 = scmp.ne.s32.totalorder %s47, %s48
      %p62 = scmp.eq.s32.totalorder %s28, 3
      %p63 = por %p61, %p62
      %p65 = scmp.ne.s32.totalorder %s48, %s64
      %p66 = scmp.eq.s32.totalorder %s28, 0
      %p67 = por %p65, %p66
      %s68 = ssub.s32 %s30, %s37
      %p69 = scmp.eq.s32.totalorder %s68, 0
      %s71 = sadd.s32 %s70, 1
      %s72 = scalar_select %p69, %s70, %s71
      %p75 = pneg %p69
      %p76 = scmp.eq.s32.totalorder %s22, 3
      %p77 = por %p75, %p76
      %p78 = scmp.ne.s32.totalorder %s70, %s73
      %p79 = scmp.eq.s32.totalorder %s22, 0
      %p80 = por %p78, %p79
      %p81 = scmp.ne.s32.totalorder %s70, %s73
      %p82 = scmp.eq.s32.totalorder %s27, 3
      %p83 = por %p81, %p82
      %p84 = scmp.ne.s32.totalorder %s73, %s74
      %p85 = scmp.eq.s32.totalorder %s27, 0
      %p86 = por %p84, %p85
      %p87 = scmp.ne.s32.totalorder %s73, %s74
      %p88 = scmp.eq.s32.totalorder %s28, 3
      %p89 = por %p87, %p88
      %p91 = scmp.ne.s32.totalorder %s74, %s90
      %p92 = scmp.eq.s32.totalorder %s28, 0
      %p93 = por %p91, %p92
      %s94 = ssub.s32 %s30, %s37
      %p95 = scmp.eq.s32.totalorder %s94, 0
      %s97 = sadd.s32 %s96, 1
      %s98 = scalar_select %p95, %s96, %s97
      %p101 = pneg %p95
      %p102 = scmp.eq.s32.totalorder %s22, 3
      %p103 = por %p101, %p102
      %p104 = scmp.ne.s32.totalorder %s96, %s99
      %p105 = scmp.eq.s32.totalorder %s22, 0
      %p106 = por %p104, %p105
      %p107 = scmp.ne.s32.totalorder %s96, %s99
      %p108 = scmp.eq.s32.totalorder %s27, 3
      %p109 = por %p107, %p108
      %p110 = scmp.ne.s32.totalorder %s99, %s100
      %p111 = scmp.eq.s32.totalorder %s27, 0
      %p112 = por %p110, %p111
      %p113 = scmp.ne.s32.totalorder %s99, %s100
      %p114 = scmp.eq.s32.totalorder %s28, 3
      %p115 = por %p113, %p114
      %p117 = scmp.ne.s32.totalorder %s100, %s116
      %p118 = scmp.eq.s32.totalorder %s28, 0
      %p119 = por %p117, %p118
      %s120 = ssub.s32 %s30, %s37
      %p121 = scmp.eq.s32.totalorder %s120, 0
      %s123 = sadd.s32 %s122, 1
      %s124 = scalar_select %p121, %s122, %s123
      %p127 = pneg %p121
      %p128 = scmp.eq.s32.totalorder %s22, 3
      %p129 = por %p127, %p128
      %p130 = scmp.ne.s32.totalorder %s122, %s125
      %p131 = scmp.eq.s32.totalorder %s22, 0
      %p132 = por %p130, %p131
      %p133 = scmp.ne.s32.totalorder %s122, %s125
      %p134 = scmp.eq.s32.totalorder %s27, 3
      %p135 = por %p133, %p134
      %p136 = scmp.ne.s32.totalorder %s125, %s126
      %p137 = scmp.eq.s32.totalorder %s27, 0
      %p138 = por %p136, %p137
      %p139 = scmp.ne.s32.totalorder %s125, %s126
      %p140 = scmp.eq.s32.totalorder %s28, 3
      %p141 = por %p139, %p140
      %p143 = scmp.ne.s32.totalorder %s126, %s142
      %p144 = scmp.eq.s32.totalorder %s28, 0
      %p145 = por %p143, %p144
      %s146 = ssub.s32 %s30, %s37
      %p147 = scmp.eq.s32.totalorder %s146, 0
      %s149 = sadd.s32 %s148, 1
      %s150 = scalar_select %p147, %s148, %s149
      %p153 = pneg %p147
      %p154 = scmp.eq.s32.totalorder %s22, 3
      %p155 = por %p153, %p154
      %p156 = scmp.ne.s32.totalorder %s148, %s151
      %p157 = scmp.eq.s32.totalorder %s22, 0
      %p158 = por %p156, %p157
      %p159 = scmp.ne.s32.totalorder %s148, %s151
      %p160 = scmp.eq.s32.totalorder %s27, 3
      %p161 = por %p159, %p160
      %p162 = scmp.ne.s32.totalorder %s151, %s152
      %p163 = scmp.eq.s32.totalorder %s27, 0
      %p164 = por %p162, %p163
      %p165 = scmp.ne.s32.totalorder %s151, %s152
      %p166 = scmp.eq.s32.totalorder %s28, 3
      %p167 = por %p165, %p166
      %p169 = scmp.ne.s32.totalorder %s152, %s168
      %p170 = scmp.eq.s32.totalorder %s28, 0
      %p171 = por %p169, %p170
      %s172 = ssub.s32 %s30, %s37
      %p173 = scmp.eq.s32.totalorder %s172, 0
      %s175 = sadd.s32 %s174, 1
      %s176 = scalar_select %p173, %s174, %s175
      %p179 = pneg %p173
      %p180 = scmp.eq.s32.totalorder %s22, 3
      %p181 = por %p179, %p180
      %p182 = scmp.ne.s32.totalorder %s174, %s177
      %p183 = scmp.eq.s32.totalorder %s22, 0
      %p184 = por %p182, %p183
      %p185 = scmp.ne.s32.totalorder %s174, %s177
      %p186 = scmp.eq.s32.totalorder %s27, 3
      %p187 = por %p185, %p186
      %p188 = scmp.ne.s32.totalorder %s177, %s178
      %p189 = scmp.eq.s32.totalorder %s27, 0
      %p190 = por %p188, %p189
      %p191 = scmp.ne.s32.totalorder %s177, %s178
      %p192 = scmp.eq.s32.totalorder %s28, 3
      %p193 = por %p191, %p192
      %p195 = scmp.ne.s32.totalorder %s178, %s194
      %p196 = scmp.eq.s32.totalorder %s28, 0
      %p197 = por %p195, %p196
      %s198 = ssub.s32 %s30, %s37
      %p199 = scmp.eq.s32.totalorder %s198, 0
      %s201 = sadd.s32 %s200, 1
      %s202 = scalar_select %p199, %s200, %s201
      %p205 = pneg %p199
      %p206 = scmp.eq.s32.totalorder %s22, 3
      %p207 = por %p205, %p206
      %p208 = scmp.ne.s32.totalorder %s200, %s203
      %p209 = scmp.eq.s32.totalorder %s22, 0
      %p210 = por %p208, %p209
      %p211 = scmp.ne.s32.totalorder %s200, %s203
      %p212 = scmp.eq.s32.totalorder %s27, 3
      %p213 = por %p211, %p212
      %p214 = scmp.ne.s32.totalorder %s203, %s204
      %p215 = scmp.eq.s32.totalorder %s27, 0
      %p216 = por %p214, %p215
      %p217 = scmp.ne.s32.totalorder %s203, %s204
      %p218 = scmp.eq.s32.totalorder %s28, 3
      %p219 = por %p217, %p218
      %p221 = scmp.ne.s32.totalorder %s204, %s220
      %p222 = scmp.eq.s32.totalorder %s28, 0
      %p223 = por %p221, %p222
      %s224 = ssub.s32 %s30, %s37
      %p225 = scmp.eq.s32.totalorder %s224, 0
      %s227 = sadd.s32 %s226, 1
      %s228 = scalar_select %p225, %s226, %s227
      %p231 = pneg %p225
      %p232 = scmp.eq.s32.totalorder %s22, 3
      %p233 = por %p231, %p232
      %p234 = scmp.ne.s32.totalorder %s226, %s229
      %p235 = scmp.eq.s32.totalorder %s22, 0
      %p236 = por %p234, %p235
      %p237 = scmp.ne.s32.totalorder %s226, %s229
      %p238 = scmp.eq.s32.totalorder %s27, 3
      %p239 = por %p237, %p238
      %p240 = scmp.ne.s32.totalorder %s229, %s230
      %p241 = scmp.eq.s32.totalorder %s27, 0
      %p242 = por %p240, %p241
      %p243 = scmp.ne.s32.totalorder %s229, %s230
      %p244 = scmp.eq.s32.totalorder %s28, 3
      %p245 = por %p243, %p244
      %p247 = scmp.ne.s32.totalorder %s230, %s246
      %p248 = scmp.eq.s32.totalorder %s28, 0
      %p249 = por %p247, %p248
      %s250 = ssub.s32 %s30, %s37
      %p251 = scmp.eq.s32.totalorder %s250, 0
      %s253 = sadd.s32 %s252, 1
      %s254 = scalar_select %p251, %s252, %s253
      %p257 = pneg %p251
      %p258 = scmp.eq.s32.totalorder %s22, 3
      %p259 = por %p257, %p258
      %p260 = scmp.ne.s32.totalorder %s252, %s255
      %p261 = scmp.eq.s32.totalorder %s22, 0
      %p262 = por %p260, %p261
      %p263 = scmp.ne.s32.totalorder %s252, %s255
      %p264 = scmp.eq.s32.totalorder %s27, 3
      %p265 = por %p263, %p264
      %p266 = scmp.ne.s32.totalorder %s255, %s256
      %p267 = scmp.eq.s32.totalorder %s27, 0
      %p268 = por %p266, %p267
      %p269 = scmp.ne.s32.totalorder %s255, %s256
      %p270 = scmp.eq.s32.totalorder %s28, 3
      %p271 = por %p269, %p270
      %p273 = scmp.ne.s32.totalorder %s256, %s272
      %p274 = scmp.eq.s32.totalorder %s28, 0
      %p275 = por %p273, %p274
      %s276 = ssub.s32 %s30, %s37
      %p277 = scmp.eq.s32.totalorder %s276, 0
      %s279 = sadd.s32 %s278, 1
      %s280 = scalar_select %p277, %s278, %s279
      %p283 = pneg %p277
      %p284 = scmp.eq.s32.totalorder %s22, 3
      %p285 = por %p283, %p284
      %p286 = scmp.ne.s32.totalorder %s278, %s281
      %p287 = scmp.eq.s32.totalorder %s22, 0
      %p288 = por %p286, %p287
      %p289 = scmp.ne.s32.totalorder %s278, %s281
      %p290 = scmp.eq.s32.totalorder %s27, 3
      %p291 = por %p289, %p290
      %p292 = scmp.ne.s32.totalorder %s281, %s282
      %p293 = scmp.eq.s32.totalorder %s27, 0
      %p294 = por %p292, %p293
      %p295 = scmp.ne.s32.totalorder %s281, %s282
      %p296 = scmp.eq.s32.totalorder %s28, 3
      %p297 = por %p295, %p296
      %p299 = scmp.ne.s32.totalorder %s282, %s298
      %p300 = scmp.eq.s32.totalorder %s28, 0
      %p301 = por %p299, %p300
      %s302 = ssub.s32 %s30, %s37
      %p303 = scmp.eq.s32.totalorder %s302, 0
      %s305 = sadd.s32 %s304, 1
      %s306 = scalar_select %p303, %s304, %s305
      %p309 = pneg %p303
      %p310 = scmp.eq.s32.totalorder %s22, 3
      %p311 = por %p309, %p310
      %p312 = scmp.ne.s32.totalorder %s304, %s307
      %p313 = scmp.eq.s32.totalorder %s22, 0
      %p314 = por %p312, %p313
      %p315 = scmp.ne.s32.totalorder %s304, %s307
      %p316 = scmp.eq.s32.totalorder %s27, 3
      %p317 = por %p315, %p316
      %p318 = scmp.ne.s32.totalorder %s307, %s308
      %p319 = scmp.eq.s32.totalorder %s27, 0
      %p320 = por %p318, %p319
      %p321 = scmp.ne.s32.totalorder %s307, %s308
      %p322 = scmp.eq.s32.totalorder %s28, 3
      %p323 = por %p321, %p322
      %p325 = scmp.ne.s32.totalorder %s308, %s324
      %p326 = scmp.eq.s32.totalorder %s28, 0
      %p327 = por %p325, %p326
      %s328 = ssub.s32 %s30, %s37
      %p329 = scmp.eq.s32.totalorder %s328, 0
      %s331 = sadd.s32 %s330, 1
      %s332 = scalar_select %p329, %s330, %s331
      %p335 = pneg %p329
      %p336 = scmp.eq.s32.totalorder %s22, 3
      %p337 = por %p335, %p336
      %p338 = scmp.ne.s32.totalorder %s330, %s333
      %p339 = scmp.eq.s32.totalorder %s22, 0
      %p340 = por %p338, %p339
      %p341 = scmp.ne.s32.totalorder %s330, %s333
      %p342 = scmp.eq.s32.totalorder %s27, 3
      %p343 = por %p341, %p342
      %p344 = scmp.ne.s32.totalorder %s333, %s334
      %p345 = scmp.eq.s32.totalorder %s27, 0
      %p346 = por %p344, %p345
      %p347 = scmp.ne.s32.totalorder %s333, %s334
      %p348 = scmp.eq.s32.totalorder %s28, 3
      %p349 = por %p347, %p348
      %p351 = scmp.ne.s32.totalorder %s334, %s350
      %p352 = scmp.eq.s32.totalorder %s28, 0
      %p353 = por %p351, %p352
      %s354 = ssub.s32 %s30, %s37
      %p355 = scmp.eq.s32.totalorder %s354, 0
      %s357 = sadd.s32 %s356, 1
      %s358 = scalar_select %p355, %s356, %s357
      %p361 = pneg %p355
      %p362 = scmp.eq.s32.totalorder %s22, 3
      %p363 = por %p361, %p362
      %p364 = scmp.ne.s32.totalorder %s356, %s359
      %p365 = scmp.eq.s32.totalorder %s22, 0
      %p366 = por %p364, %p365
      %p367 = scmp.ne.s32.totalorder %s356, %s359
      %p368 = scmp.eq.s32.totalorder %s27, 3
      %p369 = por %p367, %p368
      %p370 = scmp.ne.s32.totalorder %s359, %s360
      %p371 = scmp.eq.s32.totalorder %s27, 0
      %p372 = por %p370, %p371
      %p373 = scmp.ne.s32.totalorder %s359, %s360
      %p374 = scmp.eq.s32.totalorder %s28, 3
      %p375 = por %p373, %p374
      %p377 = scmp.ne.s32.totalorder %s360, %s376
      %p378 = scmp.eq.s32.totalorder %s28, 0
      %p379 = por %p377, %p378
      %s380 = ssub.s32 %s29, %s41
      %p381 = scmp.eq.s32.totalorder %s380, 0
      %s383 = sadd.s32 %s382, 1
      %s384 = scalar_select %p381, %s382, %s383
      %p387 = pneg %p381
      %p388 = scmp.eq.s32.totalorder %s22, 3
      %p389 = por %p387, %p388
      %p390 = scmp.ne.s32.totalorder %s382, %s385
      %p391 = scmp.eq.s32.totalorder %s22, 0
      %p392 = por %p390, %p391
      %p393 = scmp.ne.s32.totalorder %s382, %s385
      %p394 = scmp.eq.s32.totalorder %s27, 3
      %p395 = por %p393, %p394
      %p396 = scmp.ne.s32.totalorder %s385, %s386
      %p397 = scmp.eq.s32.totalorder %s27, 0
      %p398 = por %p396, %p397
      %p399 = scmp.ne.s32.totalorder %s385, %s386
      %p400 = scmp.eq.s32.totalorder %s28, 3
      %p401 = por %p399, %p400
      %p403 = scmp.ne.s32.totalorder %s386, %s402
      %p404 = scmp.eq.s32.totalorder %s28, 0
      %p405 = por %p403, %p404
      %p406 = scmp.le.s32.totalorder 1, %s22
      %p407 = scmp.lt.s32.totalorder %s22, 5
      %p408 = pnand %p406, %p407
      %p409 = pneg %p408
      // Predicated region
      $region9: #{tpu_custom_call.1} parent=5 // pred_check
        _
      $region10: #{tpu_custom_call.1} parent=5 // pred_check_branch
        %411 = sbr.rel (%p408) target = $region12
      $region11: #{tpu_custom_call.1} parent=5 // pred_region
        %s412 = ssub.s32 %s22, 1
      $region12: #{tpu_custom_call.1} parent=5 // pred_fallthru
        _
      %p413 = scmp.lt.s32.totalorder %s22, 4
      // Predicated region
      $region13: #{tpu_custom_call.1} parent=5 // pred_check
        %p414 = pneg %p413
      $region14: #{tpu_custom_call.1} parent=5 // pred_check_branch
        %416 = sbr.rel (%p414) target = $region16
      $region15: #{tpu_custom_call.1} parent=5 // pred_region
        // Predicated region
        $region17: #{tpu_custom_call.1} parent=15 // pred_check
          %p417 = pneg %p54
        $region18: #{tpu_custom_call.1} parent=15 // pred_check_branch
          %419 = sbr.rel (%p417) target = $region20
        $region19: #{tpu_custom_call.1} parent=15 // pred_region
          %p420 = scmp.lt.s32.totalorder %s29, 1
          %s421 = scalar_select %p420, %s29, 1
          %s422 = smul.addr %s421, 8
          %s423 = scalar_lea.vmem %s0, %s422
        $region20: #{tpu_custom_call.1} parent=15 // pred_fallthru
          _
        // Predicated region
        $region21: #{tpu_custom_call.1} parent=15 // pred_check
          %p424 = pneg %p80
        $region22: #{tpu_custom_call.1} parent=15 // pred_check_branch
          %426 = sbr.rel (%p424) target = $region24
        $region23: #{tpu_custom_call.1} parent=15 // pred_region
          %p427 = scmp.lt.s32.totalorder %s30, 1
          %s428 = scalar_select %p427, %s30, 1
          %s429 = scalar_lea.vmem %s1, %s428
        $region24: #{tpu_custom_call.1} parent=15 // pred_fallthru
          _
        // Predicated region
        $region25: #{tpu_custom_call.1} parent=15 // pred_check
          %p430 = pneg %p106
        $region26: #{tpu_custom_call.1} parent=15 // pred_check_branch
          %432 = sbr.rel (%p430) target = $region28
        $region27: #{tpu_custom_call.1} parent=15 // pred_region
          %p433 = scmp.lt.s32.totalorder %s30, 1
          %s434 = scalar_select %p433, %s30, 1
          %s435 = scalar_lea.vmem %s2, %s434
        $region28: #{tpu_custom_call.1} parent=15 // pred_fallthru
          _
        // Predicated region
        $region29: #{tpu_custom_call.1} parent=15 // pred_check
          %p436 = pneg %p132
        $region30: #{tpu_custom_call.1} parent=15 // pred_check_branch
          %438 = sbr.rel (%p436) target = $region32
        $region31: #{tpu_custom_call.1} parent=15 // pred_region
          %p439 = scmp.lt.s32.totalorder %s30, 1
          %s440 = scalar_select %p439, %s30, 1
          %s441 = smul.addr %s440, 4
          %s442 = smul.addr %s441, 4
          %s443 = scalar_lea.vmem %s3, %s442
        $region32: #{tpu_custom_call.1} parent=15 // pred_fallthru
          _
        // Predicated region
        $region33: #{tpu_custom_call.1} parent=15 // pred_check
          %p444 = pneg %p158
        $region34: #{tpu_custom_call.1} parent=15 // pred_check_branch
          %446 = sbr.rel (%p444) target = $region36
        $region35: #{tpu_custom_call.1} parent=15 // pred_region
          %p447 = scmp.lt.s32.totalorder %s30, 1
          %s448 = scalar_select %p447, %s30, 1
          %s449 = scalar_lea.vmem %s4, %s448
        $region36: #{tpu_custom_call.1} parent=15 // pred_fallthru
          _
        // Predicated region
        $region37: #{tpu_custom_call.1} parent=15 // pred_check
          %p450 = pneg %p184
        $region38: #{tpu_custom_call.1} parent=15 // pred_check_branch
          %452 = sbr.rel (%p450) target = $region40
        $region39: #{tpu_custom_call.1} parent=15 // pred_region
          %p453 = scmp.lt.s32.totalorder %s30, 1
          %s454 = scalar_select %p453, %s30, 1
          %s455 = smul.addr %s454, 4
          %s456 = smul.addr %s455, 4
          %s457 = scalar_lea.vmem %s5, %s456
        $region40: #{tpu_custom_call.1} parent=15 // pred_fallthru
          _
        // Predicated region
        $region41: #{tpu_custom_call.1} parent=15 // pred_check
          %p458 = pneg %p210
        $region42: #{tpu_custom_call.1} parent=15 // pred_check_branch
          %460 = sbr.rel (%p458) target = $region44
        $region43: #{tpu_custom_call.1} parent=15 // pred_region
          %p461 = scmp.lt.s32.totalorder %s30, 1
          %s462 = scalar_select %p461, %s30, 1
          %s463 = scalar_lea.vmem %s6, %s462
        $region44: #{tpu_custom_call.1} parent=15 // pred_fallthru
          _
        // Predicated region
        $region45: #{tpu_custom_call.1} parent=15 // pred_check
          %p464 = pneg %p236
        $region46: #{tpu_custom_call.1} parent=15 // pred_check_branch
          %466 = sbr.rel (%p464) target = $region48
        $region47: #{tpu_custom_call.1} parent=15 // pred_region
          %p467 = scmp.lt.s32.totalorder %s30, 1
          %s468 = scalar_select %p467, %s30, 1
          %s469 = scalar_lea.vmem %s7, %s468
        $region48: #{tpu_custom_call.1} parent=15 // pred_fallthru
          _
        // Predicated region
        $region49: #{tpu_custom_call.1} parent=15 // pred_check
          %p470 = pneg %p262
        $region50: #{tpu_custom_call.1} parent=15 // pred_check_branch
          %472 = sbr.rel (%p470) target = $region52
        $region51: #{tpu_custom_call.1} parent=15 // pred_region
          %p473 = scmp.lt.s32.totalorder %s30, 1
          %s474 = scalar_select %p473, %s30, 1
          %s475 = scalar_lea.vmem %s8, %s474
        $region52: #{tpu_custom_call.1} parent=15 // pred_fallthru
          _
        // Predicated region
        $region53: #{tpu_custom_call.1} parent=15 // pred_check
          %p476 = pneg %p288
        $region54: #{tpu_custom_call.1} parent=15 // pred_check_branch
          %478 = sbr.rel (%p476) target = $region56
        $region55: #{tpu_custom_call.1} parent=15 // pred_region
          %p479 = scmp.lt.s32.totalorder %s30, 1
          %s480 = scalar_select %p479, %s30, 1
          %s481 = smul.addr %s480, 4
          %s482 = smul.addr %s481, 4
          %s483 = scalar_lea.vmem %s9, %s482
        $region56: #{tpu_custom_call.1} parent=15 // pred_fallthru
          _
        // Predicated region
        $region57: #{tpu_custom_call.1} parent=15 // pred_check
          %p484 = pneg %p314
        $region58: #{tpu_custom_call.1} parent=15 // pred_check_branch
          %486 = sbr.rel (%p484) target = $region60
        $region59: #{tpu_custom_call.1} parent=15 // pred_region
          %p487 = scmp.lt.s32.totalorder %s30, 1
          %s488 = scalar_select %p487, %s30, 1
          %s489 = scalar_lea.vmem %s10, %s488
        $region60: #{tpu_custom_call.1} parent=15 // pred_fallthru
          _
        // Predicated region
        $region61: #{tpu_custom_call.1} parent=15 // pred_check
          %p490 = pneg %p340
        $region62: #{tpu_custom_call.1} parent=15 // pred_check_branch
          %492 = sbr.rel (%p490) target = $region64
        $region63: #{tpu_custom_call.1} parent=15 // pred_region
          %p493 = scmp.lt.s32.totalorder %s30, 1
          %s494 = scalar_select %p493, %s30, 1
          %s495 = smul.addr %s494, 16
          %s496 = smul.addr %s495, 4
          %s497 = scalar_lea.vmem %s11, %s496
        $region64: #{tpu_custom_call.1} parent=15 // pred_fallthru
          _
        // Predicated region
        $region65: #{tpu_custom_call.1} parent=15 // pred_check
          %p498 = pneg %p366
        $region66: #{tpu_custom_call.1} parent=15 // pred_check_branch
          %500 = sbr.rel (%p498) target = $region68
        $region67: #{tpu_custom_call.1} parent=15 // pred_region
          %p501 = scmp.lt.s32.totalorder %s30, 1
          %s502 = scalar_select %p501, %s30, 1
          %s503 = scalar_lea.vmem %s12, %s502
        $region68: #{tpu_custom_call.1} parent=15 // pred_fallthru
          _
      $region16: #{tpu_custom_call.1} parent=5 // pred_fallthru
        _
      %p504 = scmp.le.s32.totalorder 1, %s22
      %p505 = scmp.lt.s32.totalorder %s22, 5
      %p506 = pnand %p504, %p505
      %p507 = pneg %p506
      // Predicated region
      $region69: #{tpu_custom_call.1} parent=5 // pred_check
        _
      $region70: #{tpu_custom_call.1} parent=5 // pred_check_branch
        %509 = sbr.rel (%p506) target = $region72
      $region71: #{tpu_custom_call.1} parent=5 // pred_region
        %s510 = ssub.s32 %s22, 1
        %p511 = scmp.lt.s32.totalorder %s31, 1
        %s512 = scalar_select %p511, %s31, 1
        %s513 = smul.addr %s512, 8
        %s514 = scalar_lea.vmem %s0, %s513
        %p515 = pneg %p60
        %p516 = pneg %p57
        %p517 = scmp.lt.s32.totalorder %s32, 1
        %s518 = scalar_select %p517, %s32, 1
        %s519 = scalar_lea.vmem %s1, %s518
        %p520 = pneg %p86
        %p521 = pneg %p83
        %p522 = scmp.lt.s32.totalorder %s32, 1
        %s523 = scalar_select %p522, %s32, 1
        %s524 = scalar_lea.vmem %s2, %s523
        %p525 = pneg %p112
        %p526 = pneg %p109
        %p527 = scmp.lt.s32.totalorder %s32, 1
        %s528 = scalar_select %p527, %s32, 1
        %s529 = smul.addr %s528, 4
        %s530 = smul.addr %s529, 4
        %s531 = scalar_lea.vmem %s3, %s530
        %p532 = pneg %p138
        %p533 = pneg %p135
        %p534 = scmp.lt.s32.totalorder %s32, 1
        %s535 = scalar_select %p534, %s32, 1
        %s536 = scalar_lea.vmem %s4, %s535
        %p537 = pneg %p164
        %p538 = pneg %p161
        %p539 = scmp.lt.s32.totalorder %s32, 1
        %s540 = scalar_select %p539, %s32, 1
        %s541 = smul.addr %s540, 4
        %s542 = smul.addr %s541, 4
        %s543 = scalar_lea.vmem %s5, %s542
        %p544 = pneg %p190
        %p545 = pneg %p187
        %p546 = scmp.lt.s32.totalorder %s32, 1
        %s547 = scalar_select %p546, %s32, 1
        %s548 = scalar_lea.vmem %s6, %s547
        %p549 = pneg %p216
        %p550 = pneg %p213
        %p551 = scmp.lt.s32.totalorder %s32, 1
        %s552 = scalar_select %p551, %s32, 1
        %s553 = scalar_lea.vmem %s7, %s552
        %p554 = pneg %p242
        %p555 = pneg %p239
        %p556 = scmp.lt.s32.totalorder %s32, 1
        %s557 = scalar_select %p556, %s32, 1
        %s558 = scalar_lea.vmem %s8, %s557
        %p559 = pneg %p268
        %p560 = pneg %p265
        %p561 = scmp.lt.s32.totalorder %s32, 1
        %s562 = scalar_select %p561, %s32, 1
        %s563 = smul.addr %s562, 4
        %s564 = smul.addr %s563, 4
        %s565 = scalar_lea.vmem %s9, %s564
        %p566 = pneg %p294
        %p567 = pneg %p291
        %p568 = scmp.lt.s32.totalorder %s32, 1
        %s569 = scalar_select %p568, %s32, 1
        %s570 = scalar_lea.vmem %s10, %s569
        %p571 = pneg %p320
        %p572 = pneg %p317
        %p573 = scmp.lt.s32.totalorder %s32, 1
        %s574 = scalar_select %p573, %s32, 1
        %s575 = smul.addr %s574, 16
        %s576 = smul.addr %s575, 4
        %s577 = scalar_lea.vmem %s11, %s576
        %p578 = pneg %p346
        %p579 = pneg %p343
        %p580 = scmp.lt.s32.totalorder %s32, 1
        %s581 = scalar_select %p580, %s32, 1
        %s582 = scalar_lea.vmem %s12, %s581
        %p583 = pneg %p372
        %p584 = pneg %p369
        %p585 = pneg %p398
        %p586 = pneg %p395
        %s587 = sand.u32 %s385, 1
        %s588 = scalar_lea.sflag [#allocation3], %s587
        %s589 = sand.u32 %s385, 1
        %s590 = smul.addr %s589, 8
        %s591 = scalar_lea.vmem [#allocation2], %s590
        %p592 = scmp.lt.s32.totalorder %s31, 1
        %s593 = scalar_select %p592, %s31, 1
        %s594 = smul.addr %s593, 8
        %s595 = scalar_lea.vmem %s0, %s594
        %p596 = scmp.lt.s32.totalorder %s32, 1
        %s597 = scalar_select %p596, %s32, 1
        %s598 = scalar_lea.vmem %s1, %s597
        %p599 = scmp.lt.s32.totalorder %s32, 1
        %s600 = scalar_select %p599, %s32, 1
        %s601 = scalar_lea.vmem %s2, %s600
        %p602 = scmp.lt.s32.totalorder %s32, 1
        %s603 = scalar_select %p602, %s32, 1
        %s604 = smul.addr %s603, 4
        %s605 = smul.addr %s604, 4
        %s606 = scalar_lea.vmem %s3, %s605
        %p607 = scmp.lt.s32.totalorder %s32, 1
        %s608 = scalar_select %p607, %s32, 1
        %s609 = scalar_lea.vmem %s4, %s608
        %p610 = scmp.lt.s32.totalorder %s32, 1
        %s611 = scalar_select %p610, %s32, 1
        %s612 = smul.addr %s611, 4
        %s613 = smul.addr %s612, 4
        %s614 = scalar_lea.vmem %s5, %s613
        %p615 = scmp.lt.s32.totalorder %s32, 1
        %s616 = scalar_select %p615, %s32, 1
        %s617 = scalar_lea.vmem %s6, %s616
        %p618 = scmp.lt.s32.totalorder %s32, 1
        %s619 = scalar_select %p618, %s32, 1
        %s620 = scalar_lea.vmem %s7, %s619
        %p621 = scmp.lt.s32.totalorder %s32, 1
        %s622 = scalar_select %p621, %s32, 1
        %s623 = scalar_lea.vmem %s8, %s622
        %p624 = scmp.lt.s32.totalorder %s32, 1
        %s625 = scalar_select %p624, %s32, 1
        %s626 = smul.addr %s625, 4
        %s627 = smul.addr %s626, 4
        %s628 = scalar_lea.vmem %s9, %s627
        %p629 = scmp.lt.s32.totalorder %s32, 1
        %s630 = scalar_select %p629, %s32, 1
        %s631 = scalar_lea.vmem %s10, %s630
        %p632 = scmp.lt.s32.totalorder %s32, 1
        %s633 = scalar_select %p632, %s32, 1
        %s634 = smul.addr %s633, 16
        %s635 = smul.addr %s634, 4
        %s636 = scalar_lea.vmem %s11, %s635
        %p637 = scmp.lt.s32.totalorder %s32, 1
        %s638 = scalar_select %p637, %s32, 1
        %s639 = scalar_lea.vmem %s12, %s638
        %p641 = scmp.eq.s32.totalorder %s32, 0
        // Predicated region
        $region73: #{tpu_custom_call.1} parent=71 // pred_check
          %p642 = pneg %p641
        $region74: #{tpu_custom_call.1} parent=71 // pred_check_branch
          %644 = sbr.rel (%p642) target = $region76
        $region75: #{tpu_custom_call.1} parent=71 // pred_region
          %v645 = vld [vmem:[%s595] sm:$0xff]
          %vm646 = vcmask 261120
          %647 = vst.msk [vmem:[%s591] sm:$0xff] %vm646, %v645
        $region76: #{tpu_custom_call.1} parent=71 // pred_fallthru
          _
        %v648 = vld [vmem:[%s591] sm:$0xff]
        %v649 = vld [vmem:[%s598] sm:$0x1]
        %v650 = vld [vmem:[%s601] sm:$0x1]
        %vm651 = vcmask 261120
        %v652 = vsel %vm651, %v648, 0.0
        %653 = vadd.xlane.f32.xlu0 %v652
        %v654 = vpop.xlane.xlu0 %653
        %v655 = vrcp.pop 32.0
        %v656 = vmul.f32 %v654, %v655
        %v657 = vsub.f32 %v648, %v656
        %v658 = vmul.f32 %v657, %v657
        %v659 = vsel %vm651, %v658, 0.0
        %660 = vadd.xlane.f32.xlu0 %v659
        %v661 = vpop.xlane.xlu0 %660
        %v662 = vmul.f32 %v661, %v655
        %v663 = vadd.f32 %v662, 1e-05
        %v664 = vrsqrt.pop %v663
        %v665 = vmul.f32 %v657, %v664
        %v667 = vlaneseq
        %v668 = vshrl.u32 %v667, 7
        %v669 = vsub.s32 0, %v668
        %v670 = vrot.slane %v649, %v669
        %v672 = vmul.f32 %v665, %v670
        %v674 = vlaneseq
        %v675 = vshrl.u32 %v674, 7
        %v676 = vsub.s32 0, %v675
        %v677 = vrot.slane %v650, %v676
        %v679 = vadd.f32 %v672, %v677
        %v680 = vpack.c.bf16 %v679, %v679
        %v681 = vld [vmem:[%s606] sm:$0xf]
        %v682 = vld [vmem:[%s606 + $0x4] sm:$0xf]
        %v683 = vld [vmem:[%s606 + $0x8] sm:$0xf]
        %v684 = vld [vmem:[%s606 + $0xc] sm:$0xf]
        %v685 = vld [vmem:[%s609] sm:$0x1]
        %v687 = vlaneseq
        %v688 = vshrl.u32 %v687, 7
        %v689 = vsub.s32 0, %v688
        %v690 = vrot.slane %v685, %v689
        %v696 = vunpack.c.l.b16 %v681
        %v697 = vunpack.c.l.b16 %v682
        %v698 = vunpack.c.l.b16 %v683
        %v699 = vunpack.c.l.b16 %v684
        %v700 = vpack.c.b16 %v697, %v696
        %v701 = vpack.c.b16 %v699, %v698
        %v705 = vsel %vm651, %v680, 0
        %707 = vmatprep.subr.bf16.mxu0 0
        %708 = vmatpush1.bf16.msra.mxu0 %v700
        %709 = vmatprep.subr.bf16.mxu0 0
        %710 = vmatpush1.bf16.msra.mxu0 %v701
        %711 = vmatprep.subr.bf16.mxu0 0
        %712 = vmatpush1.bf16.msra.mxu0 0
        %713 = vmatprep.subr.bf16.mxu0 0
        %714 = vmatpush1.bf16.msra.mxu0 0
        %715 = vmatprep.subr.bf16.mxu0 0
        %716 = vmatpush1.bf16.msra.mxu0 0
        %717 = vmatprep.subr.bf16.mxu0 0
        %718 = vmatpush1.bf16.msra.mxu0 0
        %719 = vmatprep.subr.bf16.mxu0 0
        %720 = vmatpush1.bf16.msra.mxu0 0
        %721 = vmatprep.subr.bf16.mxu0 0
        %722 = vmatpush1.bf16.msra.mxu0 0
        %723 = vmatprep.subr.bf16.mxu0 0
        %724 = vmatpush1.bf16.msra.mxu0 0
        %725 = vmatprep.subr.bf16.mxu0 0
        %726 = vmatpush1.bf16.msra.mxu0 0
        %727 = vmatprep.subr.bf16.mxu0 0
        %728 = vmatpush1.bf16.msra.mxu0 0
        %729 = vmatprep.subr.bf16.mxu0 0
        %730 = vmatpush1.bf16.msra.mxu0 0
        %731 = vmatprep.subr.bf16.mxu0 0
        %732 = vmatpush1.bf16.msra.mxu0 0
        %733 = vmatprep.subr.bf16.mxu0 0
        %734 = vmatpush1.bf16.msra.mxu0 0
        %735 = vmatprep.subr.bf16.mxu0 0
        %736 = vmatpush1.bf16.msra.mxu0 0
        %737 = vmatprep.subr.bf16.mxu0 0
        %738 = vmatpush1.bf16.msra.mxu0 0
        %739 = vmatprep.mubr.bf16.mxu0 0
        %740 = vmatmul.mubr.bf16.gmra.mrb[0].mxu0 %v705
        %v741 = vpop.f32.mrb[0].mxu0
        %v742 = vadd.f32 %v690, %v741
        %v743 = vpop.f32.mrb[0].mxu0
        %v744 = vpop.f32.mrb[0].mxu0
        %v745 = vpop.f32.mrb[0].mxu0
        %746 = vdwg.mxu0
        %v747 = vpack.c.bf16 %v742, %v742
        %v748 = vld [vmem:[%s614] sm:$0xf]
        %v749 = vld [vmem:[%s614 + $0x4] sm:$0xf]
        %v750 = vld [vmem:[%s614 + $0x8] sm:$0xf]
        %v751 = vld [vmem:[%s614 + $0xc] sm:$0xf]
        %753 = vrot.lane.b32.xlu0 %v747, 96
        %v754 = vpop.permute.xlu0 %753
        %vm755 = vcmask 64512
        %v757 = vsel %vm755, %v747, 0
        %v760 = vsel %vm755, %v754, 0
        %762 = vmatprep.subr.bf16.mxu0 0
        %763 = vmatpush1.bf16.xpose.msra.mxu0 %v760
        %764 = vmatprep.subr.bf16.mxu0 0
        %765 = vmatpush1.bf16.xpose.msra.mxu0 0
        %766 = vmatprep.subr.bf16.mxu0 0
        %767 = vmatpush1.bf16.xpose.msra.mxu0 0
        %768 = vmatprep.subr.bf16.mxu0 0
        %769 = vmatpush1.bf16.xpose.msra.mxu0 0
        %770 = vmatprep.subr.bf16.mxu0 0
        %771 = vmatpush1.bf16.xpose.msra.mxu0 0
        %772 = vmatprep.subr.bf16.mxu0 0
        %773 = vmatpush1.bf16.xpose.msra.mxu0 0
        %774 = vmatprep.subr.bf16.mxu0 0
        %775 = vmatpush1.bf16.xpose.msra.mxu0 0
        %776 = vmatprep.subr.bf16.mxu0 0
        %777 = vmatpush1.bf16.xpose.msra.mxu0 0
        %778 = vmatprep.subr.bf16.mxu0 0
        %779 = vmatpush1.bf16.xpose.msra.mxu0 0
        %780 = vmatprep.subr.bf16.mxu0 0
        %781 = vmatpush1.bf16.xpose.msra.mxu0 0
        %782 = vmatprep.subr.bf16.mxu0 0
        %783 = vmatpush1.bf16.xpose.msra.mxu0 0
        %784 = vmatprep.subr.bf16.mxu0 0
        %785 = vmatpush1.bf16.xpose.msra.mxu0 0
        %786 = vmatprep.subr.bf16.mxu0 0
        %787 = vmatpush1.bf16.xpose.msra.mxu0 0
        %788 = vmatprep.subr.bf16.mxu0 0
        %789 = vmatpush1.bf16.xpose.msra.mxu0 0
        %790 = vmatprep.subr.bf16.mxu0 0
        %791 = vmatpush1.bf16.xpose.msra.mxu0 0
        %792 = vmatprep.subr.bf16.mxu0 0
        %793 = vmatpush1.bf16.xpose.msra.mxu0 0
        %794 = vmatprep.mubr.bf16.mxu0 0
        %795 = vmatmul.mubr.bf16.gmra.mrb[0].mxu0 %v757
        %v796 = vpop.f32.mrb[0].mxu0
        %v797 = vadd.f32 0.0, %v796
        %v798 = vpop.f32.mrb[0].mxu0
        %v799 = vpop.f32.mrb[0].mxu0
        %v800 = vpop.f32.mrb[0].mxu0
        %801 = vdwg.mxu0
        %v802 = vsel %vm755, %v797, -inf
        %803 = vmax.xlane.f32.xlu0 %v802
        %v804 = vpop.xlane.xlu0 %803
        %v805 = vsub.f32 %v797, %v804
        %v806 = vmul.f32 %v805, 1.442695
        %v807 = vpow.pop %v806
        %v808 = vsel %vm755, %v807, 0.0
        %809 = vadd.xlane.f32.xlu0 %v808
        %v810 = vpop.xlane.xlu0 %809
        %v811 = vrcp.pop %v810
        %v812 = vpack.c.bf16 %v807, %v807
        %813 = vrot.lane.b32.xlu0 %v747, 64
        %v814 = vpop.permute.xlu0 %813
        %v816 = vsel %vm755, %v812, 0
        %vm818 = vcmask 1043456
        %v820 = vsel %vm818, %v814, 0
        %822 = vmatprep.subr.bf16.mxu0 0
        %823 = vmatpush1.bf16.msra.mxu0 %v820
        %824 = vmatprep.subr.bf16.mxu0 0
        %825 = vmatpush1.bf16.msra.mxu0 0
        %826 = vmatprep.subr.bf16.mxu0 0
        %827 = vmatpush1.bf16.msra.mxu0 0
        %828 = vmatprep.subr.bf16.mxu0 0
        %829 = vmatpush1.bf16.msra.mxu0 0
        %830 = vmatprep.subr.bf16.mxu0 0
        %831 = vmatpush1.bf16.msra.mxu0 0
        %832 = vmatprep.subr.bf16.mxu0 0
        %833 = vmatpush1.bf16.msra.mxu0 0
        %834 = vmatprep.subr.bf16.mxu0 0
        %835 = vmatpush1.bf16.msra.mxu0 0
        %836 = vmatprep.subr.bf16.mxu0 0
        %837 = vmatpush1.bf16.msra.mxu0 0
        %838 = vmatprep.subr.bf16.mxu0 0
        %839 = vmatpush1.bf16.msra.mxu0 0
        %840 = vmatprep.subr.bf16.mxu0 0
        %841 = vmatpush1.bf16.msra.mxu0 0
        %842 = vmatprep.subr.bf16.mxu0 0
        %843 = vmatpush1.bf16.msra.mxu0 0
        %844 = vmatprep.subr.bf16.mxu0 0
        %845 = vmatpush1.bf16.msra.mxu0 0
        %846 = vmatprep.subr.bf16.mxu0 0
        %847 = vmatpush1.bf16.msra.mxu0 0
        %848 = vmatprep.subr.bf16.mxu0 0
        %849 = vmatpush1.bf16.msra.mxu0 0
        %850 = vmatprep.subr.bf16.mxu0 0
        %851 = vmatpush1.bf16.msra.mxu0 0
        %852 = vmatprep.subr.bf16.mxu0 0
        %853 = vmatpush1.bf16.msra.mxu0 0
        %854 = vmatprep.mubr.bf16.mxu0 0
        %855 = vmatmul.mubr.bf16.gmra.mrb[0].mxu0 %v816
        %v856 = vpop.f32.mrb[0].mxu0
        %v857 = vadd.f32 0.0, %v856
        %v858 = vpop.f32.mrb[0].mxu0
        %v859 = vpop.f32.mrb[0].mxu0
        %v860 = vpop.f32.mrb[0].mxu0
        %861 = vdwg.mxu0
        %v862 = vmul.f32 %v857, %v811
        %v863 = vpack.c.bf16 %v862, %v862
        %864 = vrot.lane.b32.xlu0 %v747, 120
        %v865 = vpop.permute.xlu0 %864
        %866 = vrot.lane.b32.xlu0 %v747, 88
        %v867 = vpop.permute.xlu0 %866
        %v869 = vsel %vm755, %v865, 0
        %v872 = vsel %vm755, %v867, 0
        %874 = vmatprep.subr.bf16.mxu0 0
        %875 = vmatpush1.bf16.xpose.msra.mxu0 %v872
        %876 = vmatprep.subr.bf16.mxu0 0
        %877 = vmatpush1.bf16.xpose.msra.mxu0 0
        %878 = vmatprep.subr.bf16.mxu0 0
        %879 = vmatpush1.bf16.xpose.msra.mxu0 0
        %880 = vmatprep.subr.bf16.mxu0 0
        %881 = vmatpush1.bf16.xpose.msra.mxu0 0
        %882 = vmatprep.subr.bf16.mxu0 0
        %883 = vmatpush1.bf16.xpose.msra.mxu0 0
        %884 = vmatprep.subr.bf16.mxu0 0
        %885 = vmatpush1.bf16.xpose.msra.mxu0 0
        %886 = vmatprep.subr.bf16.mxu0 0
        %887 = vmatpush1.bf16.xpose.msra.mxu0 0
        %888 = vmatprep.subr.bf16.mxu0 0
        %889 = vmatpush1.bf16.xpose.msra.mxu0 0
        %890 = vmatprep.subr.bf16.mxu0 0
        %891 = vmatpush1.bf16.xpose.msra.mxu0 0
        %892 = vmatprep.subr.bf16.mxu0 0
        %893 = vmatpush1.bf16.xpose.msra.mxu0 0
        %894 = vmatprep.subr.bf16.mxu0 0
        %895 = vmatpush1.bf16.xpose.msra.mxu0 0
        %896 = vmatprep.subr.bf16.mxu0 0
        %897 = vmatpush1.bf16.xpose.msra.mxu0 0
        %898 = vmatprep.subr.bf16.mxu0 0
        %899 = vmatpush1.bf16.xpose.msra.mxu0 0
        %900 = vmatprep.subr.bf16.mxu0 0
        %901 = vmatpush1.bf16.xpose.msra.mxu0 0
        %902 = vmatprep.subr.bf16.mxu0 0
        %903 = vmatpush1.bf16.xpose.msra.mxu0 0
        %904 = vmatprep.subr.bf16.mxu0 0
        %905 = vmatpush1.bf16.xpose.msra.mxu0 0
        %906 = vmatprep.mubr.bf16.mxu0 0
        %907 = vmatmul.mubr.bf16.gmra.mrb[0].mxu0 %v869
        %v908 = vpop.f32.mrb[0].mxu0
        %v909 = vadd.f32 0.0, %v908
        %v910 = vpop.f32.mrb[0].mxu0
        %v911 = vpop.f32.mrb[0].mxu0
        %v912 = vpop.f32.mrb[0].mxu0
        %913 = vdwg.mxu0
        %v914 = vsel %vm755, %v909, -inf
        %915 = vmax.xlane.f32.xlu0 %v914
        %v916 = vpop.xlane.xlu0 %915
        %v917 = vsub.f32 %v909, %v916
        %v918 = vmul.f32 %v917, 1.442695
        %v919 = vpow.pop %v918
        %v920 = vsel %vm755, %v919, 0.0
        %921 = vadd.xlane.f32.xlu0 %v920
        %v922 = vpop.xlane.xlu0 %921
        %v923 = vrcp.pop %v922
        %v924 = vpack.c.bf16 %v919, %v919
        %925 = vrot.lane.b32.xlu0 %v747, 56
        %v926 = vpop.permute.xlu0 %925
        %v928 = vsel %vm755, %v924, 0
        %v931 = vsel %vm818, %v926, 0
        %933 = vmatprep.subr.bf16.mxu0 0
        %934 = vmatpush1.bf16.msra.mxu0 %v931
        %935 = vmatprep.subr.bf16.mxu0 0
        %936 = vmatpush1.bf16.msra.mxu0 0
        %937 = vmatprep.subr.bf16.mxu0 0
        %938 = vmatpush1.bf16.msra.mxu0 0
        %939 = vmatprep.subr.bf16.mxu0 0
        %940 = vmatpush1.bf16.msra.mxu0 0
        %941 = vmatprep.subr.bf16.mxu0 0
        %942 = vmatpush1.bf16.msra.mxu0 0
        %943 = vmatprep.subr.bf16.mxu0 0
        %944 = vmatpush1.bf16.msra.mxu0 0
        %945 = vmatprep.subr.bf16.mxu0 0
        %946 = vmatpush1.bf16.msra.mxu0 0
        %947 = vmatprep.subr.bf16.mxu0 0
        %948 = vmatpush1.bf16.msra.mxu0 0
        %949 = vmatprep.subr.bf16.mxu0 0
        %950 = vmatpush1.bf16.msra.mxu0 0
        %951 = vmatprep.subr.bf16.mxu0 0
        %952 = vmatpush1.bf16.msra.mxu0 0
        %953 = vmatprep.subr.bf16.mxu0 0
        %954 = vmatpush1.bf16.msra.mxu0 0
        %955 = vmatprep.subr.bf16.mxu0 0
        %956 = vmatpush1.bf16.msra.mxu0 0
        %957 = vmatprep.subr.bf16.mxu0 0
        %958 = vmatpush1.bf16.msra.mxu0 0
        %959 = vmatprep.subr.bf16.mxu0 0
        %960 = vmatpush1.bf16.msra.mxu0 0
        %961 = vmatprep.subr.bf16.mxu0 0
        %962 = vmatpush1.bf16.msra.mxu0 0
        %963 = vmatprep.subr.bf16.mxu0 0
        %964 = vmatpush1.bf16.msra.mxu0 0
        %965 = vmatprep.mubr.bf16.mxu0 0
        %966 = vmatmul.mubr.bf16.gmra.mrb[0].mxu0 %v928
        %v967 = vpop.f32.mrb[0].mxu0
        %v968 = vadd.f32 0.0, %v967
        %v969 = vpop.f32.mrb[0].mxu0
        %v970 = vpop.f32.mrb[0].mxu0
        %v971 = vpop.f32.mrb[0].mxu0
        %972 = vdwg.mxu0
        %v973 = vmul.f32 %v968, %v923
        %v974 = vpack.c.bf16 %v973, %v973
        %v976 = vsel %vm755, %v974, 0
        %v979 = vsel %vm818, %v749, 0
        %981 = vmatprep.subr.bf16.mxu0 0
        %982 = vmatpush1.bf16.msra.mxu0 %v979
        %983 = vmatprep.subr.bf16.mxu0 0
        %984 = vmatpush1.bf16.msra.mxu0 0
        %985 = vmatprep.subr.bf16.mxu0 0
        %986 = vmatpush1.bf16.msra.mxu0 0
        %987 = vmatprep.subr.bf16.mxu0 0
        %988 = vmatpush1.bf16.msra.mxu0 0
        %989 = vmatprep.subr.bf16.mxu0 0
        %990 = vmatpush1.bf16.msra.mxu0 0
        %991 = vmatprep.subr.bf16.mxu0 0
        %992 = vmatpush1.bf16.msra.mxu0 0
        %993 = vmatprep.subr.bf16.mxu0 0
        %994 = vmatpush1.bf16.msra.mxu0 0
        %995 = vmatprep.subr.bf16.mxu0 0
        %996 = vmatpush1.bf16.msra.mxu0 0
        %997 = vmatprep.subr.bf16.mxu0 0
        %998 = vmatpush1.bf16.msra.mxu0 0
        %999 = vmatprep.subr.bf16.mxu0 0
        %1000 = vmatpush1.bf16.msra.mxu0 0
        %1001 = vmatprep.subr.bf16.mxu0 0
        %1002 = vmatpush1.bf16.msra.mxu0 0
        %1003 = vmatprep.subr.bf16.mxu0 0
        %1004 = vmatpush1.bf16.msra.mxu0 0
        %1005 = vmatprep.subr.bf16.mxu0 0
        %1006 = vmatpush1.bf16.msra.mxu0 0
        %1007 = vmatprep.subr.bf16.mxu0 0
        %1008 = vmatpush1.bf16.msra.mxu0 0
        %1009 = vmatprep.subr.bf16.mxu0 0
        %1010 = vmatpush1.bf16.msra.mxu0 0
        %1011 = vmatprep.subr.bf16.mxu0 0
        %1012 = vmatpush1.bf16.msra.mxu0 0
        %1013 = vmatprep.mubr.bf16.mxu0 0
        %1014 = vmatmul.mubr.bf16.gmra.mrb[0].mxu0 %v976
        %v1015 = vpop.f32.mrb[0].mxu0
        %v1016 = vadd.f32 0.0, %v1015
        %v1017 = vpop.f32.mrb[0].mxu0
        %v1018 = vpop.f32.mrb[0].mxu0
        %v1019 = vpop.f32.mrb[0].mxu0
        %1020 = vdwg.mxu0
        %v1022 = vsel %vm755, %v863, 0
        %v1025 = vsel %vm818, %v748, 0
        %1027 = vmatprep.subr.bf16.mxu0 0
        %1028 = vmatpush1.bf16.msra.mxu0 %v1025
        %1029 = vmatprep.subr.bf16.mxu0 0
        %1030 = vmatpush1.bf16.msra.mxu0 0
        %1031 = vmatprep.subr.bf16.mxu0 0
        %1032 = vmatpush1.bf16.msra.mxu0 0
        %1033 = vmatprep.subr.bf16.mxu0 0
        %1034 = vmatpush1.bf16.msra.mxu0 0
        %1035 = vmatprep.subr.bf16.mxu0 0
        %1036 = vmatpush1.bf16.msra.mxu0 0
        %1037 = vmatprep.subr.bf16.mxu0 0
        %1038 = vmatpush1.bf16.msra.mxu0 0
        %1039 = vmatprep.subr.bf16.mxu0 0
        %1040 = vmatpush1.bf16.msra.mxu0 0
        %1041 = vmatprep.subr.bf16.mxu0 0
        %1042 = vmatpush1.bf16.msra.mxu0 0
        %1043 = vmatprep.subr.bf16.mxu0 0
        %1044 = vmatpush1.bf16.msra.mxu0 0
        %1045 = vmatprep.subr.bf16.mxu0 0
        %1046 = vmatpush1.bf16.msra.mxu0 0
        %1047 = vmatprep.subr.bf16.mxu0 0
        %1048 = vmatpush1.bf16.msra.mxu0 0
        %1049 = vmatprep.subr.bf16.mxu0 0
        %1050 = vmatpush1.bf16.msra.mxu0 0
        %1051 = vmatprep.subr.bf16.mxu0 0
        %1052 = vmatpush1.bf16.msra.mxu0 0
        %1053 = vmatprep.subr.bf16.mxu0 0
        %1054 = vmatpush1.bf16.msra.mxu0 0
        %1055 = vmatprep.subr.bf16.mxu0 0
        %1056 = vmatpush1.bf16.msra.mxu0 0
        %1057 = vmatprep.subr.bf16.mxu0 0
        %1058 = vmatpush1.bf16.msra.mxu0 0
        %1059 = vmatprep.mubr.bf16.mxu0 0
        %1060 = vmatmul.mubr.bf16.gmra.mrb[0].mxu0 %v1022
        %v1061 = vpop.f32.mrb[0].mxu0
        %v1062 = vadd.f32 %v1016, %v1061
        %v1063 = vpop.f32.mrb[0].mxu0
        %v1064 = vpop.f32.mrb[0].mxu0
        %v1065 = vpop.f32.mrb[0].mxu0
        %1066 = vdwg.mxu0
        %1067 = vrot.lane.b32.xlu0 %v747, 112
        %v1068 = vpop.permute.xlu0 %1067
        %1069 = vrot.lane.b32.xlu0 %v747, 80
        %v1070 = vpop.permute.xlu0 %1069
        %v1072 = vsel %vm755, %v1068, 0
        %v1075 = vsel %vm755, %v1070, 0
        %1077 = vmatprep.subr.bf16.mxu0 0
        %1078 = vmatpush1.bf16.xpose.msra.mxu0 %v1075
        %1079 = vmatprep.subr.bf16.mxu0 0
        %1080 = vmatpush1.bf16.xpose.msra.mxu0 0
        %1081 = vmatprep.subr.bf16.mxu0 0
        %1082 = vmatpush1.bf16.xpose.msra.mxu0 0
        %1083 = vmatprep.subr.bf16.mxu0 0
        %1084 = vmatpush1.bf16.xpose.msra.mxu0 0
        %1085 = vmatprep.subr.bf16.mxu0 0
        %1086 = vmatpush1.bf16.xpose.msra.mxu0 0
        %1087 = vmatprep.subr.bf16.mxu0 0
        %1088 = vmatpush1.bf16.xpose.msra.mxu0 0
        %1089 = vmatprep.subr.bf16.mxu0 0
        %1090 = vmatpush1.bf16.xpose.msra.mxu0 0
        %1091 = vmatprep.subr.bf16.mxu0 0
        %1092 = vmatpush1.bf16.xpose.msra.mxu0 0
        %1093 = vmatprep.subr.bf16.mxu0 0
        %1094 = vmatpush1.bf16.xpose.msra.mxu0 0
        %1095 = vmatprep.subr.bf16.mxu0 0
        %1096 = vmatpush1.bf16.xpose.msra.mxu0 0
        %1097 = vmatprep.subr.bf16.mxu0 0
        %1098 = vmatpush1.bf16.xpose.msra.mxu0 0
        %1099 = vmatprep.subr.bf16.mxu0 0
        %1100 = vmatpush1.bf16.xpose.msra.mxu0 0
        %1101 = vmatprep.subr.bf16.mxu0 0
        %1102 = vmatpush1.bf16.xpose.msra.mxu0 0
        %1103 = vmatprep.subr.bf16.mxu0 0
        %1104 = vmatpush1.bf16.xpose.msra.mxu0 0
        %1105 = vmatprep.subr.bf16.mxu0 0
        %1106 = vmatpush1.bf16.xpose.msra.mxu0 0
        %1107 = vmatprep.subr.bf16.mxu0 0
        %1108 = vmatpush1.bf16.xpose.msra.mxu0 0
        %1109 = vmatprep.mubr.bf16.mxu0 0
        %1110 = vmatmul.mubr.bf16.gmra.mrb[0].mxu0 %v1072
        %v1111 = vpop.f32.mrb[0].mxu0
        %v1112 = vadd.f32 0.0, %v1111
        %v1113 = vpop.f32.mrb[0].mxu0
        %v1114 = vpop.f32.mrb[0].mxu0
        %v1115 = vpop.f32.mrb[0].mxu0
        %1116 = vdwg.mxu0
        %v1117 = vsel %vm755, %v1112, -inf
        %1118 = vmax.xlane.f32.xlu0 %v1117
        %v1119 = vpop.xlane.xlu0 %1118
        %v1120 = vsub.f32 %v1112, %v1119
        %v1121 = vmul.f32 %v1120, 1.442695
        %v1122 = vpow.pop %v1121
        %v1123 = vsel %vm755, %v1122, 0.0
        %1124 = vadd.xlane.f32.xlu0 %v1123
        %v1125 = vpop.xlane.xlu0 %1124
        %v1126 = vrcp.pop %v1125
        %v1127 = vpack.c.bf16 %v1122, %v1122
        %1128 = vrot.lane.b32.xlu0 %v747, 48
        %v1129 = vpop.permute.xlu0 %1128
        %v1131 = vsel %vm755, %v1127, 0
        %v1134 = vsel %vm818, %v1129, 0
        %1136 = vmatprep.subr.bf16.mxu0 0
        %1137 = vmatpush1.bf16.msra.mxu0 %v1134
        %1138 = vmatprep.subr.bf16.mxu0 0
        %1139 = vmatpush1.bf16.msra.mxu0 0
        %1140 = vmatprep.subr.bf16.mxu0 0
        %1141 = vmatpush1.bf16.msra.mxu0 0
        %1142 = vmatprep.subr.bf16.mxu0 0
        %1143 = vmatpush1.bf16.msra.mxu0 0
        %1144 = vmatprep.subr.bf16.mxu0 0
        %1145 = vmatpush1.bf16.msra.mxu0 0
        %1146 = vmatprep.subr.bf16.mxu0 0
        %1147 = vmatpush1.bf16.msra.mxu0 0
        %1148 = vmatprep.subr.bf16.mxu0 0
        %1149 = vmatpush1.bf16.msra.mxu0 0
        %1150 = vmatprep.subr.bf16.mxu0 0
        %1151 = vmatpush1.bf16.msra.mxu0 0
        %1152 = vmatprep.subr.bf16.mxu0 0
        %1153 = vmatpush1.bf16.msra.mxu0 0
        %1154 = vmatprep.subr.bf16.mxu0 0
        %1155 = vmatpush1.bf16.msra.mxu0 0
        %1156 = vmatprep.subr.bf16.mxu0 0
        %1157 = vmatpush1.bf16.msra.mxu0 0
        %1158 = vmatprep.subr.bf16.mxu0 0
        %1159 = vmatpush1.bf16.msra.mxu0 0
        %1160 = vmatprep.subr.bf16.mxu0 0
        %1161 = vmatpush1.bf16.msra.mxu0 0
        %1162 = vmatprep.subr.bf16.mxu0 0
        %1163 = vmatpush1.bf16.msra.mxu0 0
        %1164 = vmatprep.subr.bf16.mxu0 0
        %1165 = vmatpush1.bf16.msra.mxu0 0
        %1166 = vmatprep.subr.bf16.mxu0 0
        %1167 = vmatpush1.bf16.msra.mxu0 0
        %1168 = vmatprep.mubr.bf16.mxu0 0
        %1169 = vmatmul.mubr.bf16.gmra.mrb[0].mxu0 %v1131
        %v1170 = vpop.f32.mrb[0].mxu0
        %v1171 = vadd.f32 0.0, %v1170
        %v1172 = vpop.f32.mrb[0].mxu0
        %v1173 = vpop.f32.mrb[0].mxu0
        %v1174 = vpop.f32.mrb[0].mxu0
        %1175 = vdwg.mxu0
        %v1176 = vmul.f32 %v1171, %v1126
        %v1177 = vpack.c.bf16 %v1176, %v1176
        %v1179 = vsel %vm755, %v1177, 0
        %v1182 = vsel %vm818, %v750, 0
        %1184 = vmatprep.subr.bf16.mxu0 0
        %1185 = vmatpush1.bf16.msra.mxu0 %v1182
        %1186 = vmatprep.subr.bf16.mxu0 0
        %1187 = vmatpush1.bf16.msra.mxu0 0
        %1188 = vmatprep.subr.bf16.mxu0 0
        %1189 = vmatpush1.bf16.msra.mxu0 0
        %1190 = vmatprep.subr.bf16.mxu0 0
        %1191 = vmatpush1.bf16.msra.mxu0 0
        %1192 = vmatprep.subr.bf16.mxu0 0
        %1193 = vmatpush1.bf16.msra.mxu0 0
        %1194 = vmatprep.subr.bf16.mxu0 0
        %1195 = vmatpush1.bf16.msra.mxu0 0
        %1196 = vmatprep.subr.bf16.mxu0 0
        %1197 = vmatpush1.bf16.msra.mxu0 0
        %1198 = vmatprep.subr.bf16.mxu0 0
        %1199 = vmatpush1.bf16.msra.mxu0 0
        %1200 = vmatprep.subr.bf16.mxu0 0
        %1201 = vmatpush1.bf16.msra.mxu0 0
        %1202 = vmatprep.subr.bf16.mxu0 0
        %1203 = vmatpush1.bf16.msra.mxu0 0
        %1204 = vmatprep.subr.bf16.mxu0 0
        %1205 = vmatpush1.bf16.msra.mxu0 0
        %1206 = vmatprep.subr.bf16.mxu0 0
        %1207 = vmatpush1.bf16.msra.mxu0 0
        %1208 = vmatprep.subr.bf16.mxu0 0
        %1209 = vmatpush1.bf16.msra.mxu0 0
        %1210 = vmatprep.subr.bf16.mxu0 0
        %1211 = vmatpush1.bf16.msra.mxu0 0
        %1212 = vmatprep.subr.bf16.mxu0 0
        %1213 = vmatpush1.bf16.msra.mxu0 0
        %1214 = vmatprep.subr.bf16.mxu0 0
        %1215 = vmatpush1.bf16.msra.mxu0 0
        %1216 = vmatprep.mubr.bf16.mxu0 0
        %1217 = vmatmul.mubr.bf16.gmra.mrb[0].mxu0 %v1179
        %v1218 = vpop.f32.mrb[0].mxu0
        %v1219 = vadd.f32 0.0, %v1218
        %v1220 = vpop.f32.mrb[0].mxu0
        %v1221 = vpop.f32.mrb[0].mxu0
        %v1222 = vpop.f32.mrb[0].mxu0
        %1223 = vdwg.mxu0
        %v1224 = vadd.f32 %v1062, %v1219
        %1225 = vrot.lane.b32.xlu0 %v747, 104
        %v1226 = vpop.permute.xlu0 %1225
        %1227 = vrot.lane.b32.xlu0 %v747, 72
        %v1228 = vpop.permute.xlu0 %1227
        %v1230 = vsel %vm755, %v1226, 0
        %v1233 = vsel %vm755, %v1228, 0
        %1235 = vmatprep.subr.bf16.mxu0 0
        %1236 = vmatpush1.bf16.xpose.msra.mxu0 %v1233
        %1237 = vmatprep.subr.bf16.mxu0 0
        %1238 = vmatpush1.bf16.xpose.msra.mxu0 0
        %1239 = vmatprep.subr.bf16.mxu0 0
        %1240 = vmatpush1.bf16.xpose.msra.mxu0 0
        %1241 = vmatprep.subr.bf16.mxu0 0
        %1242 = vmatpush1.bf16.xpose.msra.mxu0 0
        %1243 = vmatprep.subr.bf16.mxu0 0
        %1244 = vmatpush1.bf16.xpose.msra.mxu0 0
        %1245 = vmatprep.subr.bf16.mxu0 0
        %1246 = vmatpush1.bf16.xpose.msra.mxu0 0
        %1247 = vmatprep.subr.bf16.mxu0 0
        %1248 = vmatpush1.bf16.xpose.msra.mxu0 0
        %1249 = vmatprep.subr.bf16.mxu0 0
        %1250 = vmatpush1.bf16.xpose.msra.mxu0 0
        %1251 = vmatprep.subr.bf16.mxu0 0
        %1252 = vmatpush1.bf16.xpose.msra.mxu0 0
        %1253 = vmatprep.subr.bf16.mxu0 0
        %1254 = vmatpush1.bf16.xpose.msra.mxu0 0
        %1255 = vmatprep.subr.bf16.mxu0 0
        %1256 = vmatpush1.bf16.xpose.msra.mxu0 0
        %1257 = vmatprep.subr.bf16.mxu0 0
        %1258 = vmatpush1.bf16.xpose.msra.mxu0 0
        %1259 = vmatprep.subr.bf16.mxu0 0
        %1260 = vmatpush1.bf16.xpose.msra.mxu0 0
        %1261 = vmatprep.subr.bf16.mxu0 0
        %1262 = vmatpush1.bf16.xpose.msra.mxu0 0
        %1263 = vmatprep.subr.bf16.mxu0 0
        %1264 = vmatpush1.bf16.xpose.msra.mxu0 0
        %1265 = vmatprep.subr.bf16.mxu0 0
        %1266 = vmatpush1.bf16.xpose.msra.mxu0 0
        %1267 = vmatprep.mubr.bf16.mxu0 0
        %1268 = vmatmul.mubr.bf16.gmra.mrb[0].mxu0 %v1230
        %v1269 = vpop.f32.mrb[0].mxu0
        %v1270 = vadd.f32 0.0, %v1269
        %v1271 = vpop.f32.mrb[0].mxu0
        %v1272 = vpop.f32.mrb[0].mxu0
        %v1273 = vpop.f32.mrb[0].mxu0
        %1274 = vdwg.mxu0
        %v1275 = vsel %vm755, %v1270, -inf
        %1276 = vmax.xlane.f32.xlu0 %v1275
        %v1277 = vpop.xlane.xlu0 %1276
        %v1278 = vsub.f32 %v1270, %v1277
        %v1279 = vmul.f32 %v1278, 1.442695
        %v1280 = vpow.pop %v1279
        %v1281 = vsel %vm755, %v1280, 0.0
        %1282 = vadd.xlane.f32.xlu0 %v1281
        %v1283 = vpop.xlane.xlu0 %1282
        %v1284 = vrcp.pop %v1283
        %v1285 = vpack.c.bf16 %v1280, %v1280
        %1286 = vrot.lane.b32.xlu0 %v747, 40
        %v1287 = vpop.permute.xlu0 %1286
        %v1289 = vsel %vm755, %v1285, 0
        %v1292 = vsel %vm818, %v1287, 0
        %1294 = vmatprep.subr.bf16.mxu0 0
        %1295 = vmatpush1.bf16.msra.mxu0 %v1292
        %1296 = vmatprep.subr.bf16.mxu0 0
        %1297 = vmatpush1.bf16.msra.mxu0 0
        %1298 = vmatprep.subr.bf16.mxu0 0
        %1299 = vmatpush1.bf16.msra.mxu0 0
        %1300 = vmatprep.subr.bf16.mxu0 0
        %1301 = vmatpush1.bf16.msra.mxu0 0
        %1302 = vmatprep.subr.bf16.mxu0 0
        %1303 = vmatpush1.bf16.msra.mxu0 0
        %1304 = vmatprep.subr.bf16.mxu0 0
        %1305 = vmatpush1.bf16.msra.mxu0 0
        %1306 = vmatprep.subr.bf16.mxu0 0
        %1307 = vmatpush1.bf16.msra.mxu0 0
        %1308 = vmatprep.subr.bf16.mxu0 0
        %1309 = vmatpush1.bf16.msra.mxu0 0
        %1310 = vmatprep.subr.bf16.mxu0 0
        %1311 = vmatpush1.bf16.msra.mxu0 0
        %1312 = vmatprep.subr.bf16.mxu0 0
        %1313 = vmatpush1.bf16.msra.mxu0 0
        %1314 = vmatprep.subr.bf16.mxu0 0
        %1315 = vmatpush1.bf16.msra.mxu0 0
        %1316 = vmatprep.subr.bf16.mxu0 0
        %1317 = vmatpush1.bf16.msra.mxu0 0
        %1318 = vmatprep.subr.bf16.mxu0 0
        %1319 = vmatpush1.bf16.msra.mxu0 0
        %1320 = vmatprep.subr.bf16.mxu0 0
        %1321 = vmatpush1.bf16.msra.mxu0 0
        %1322 = vmatprep.subr.bf16.mxu0 0
        %1323 = vmatpush1.bf16.msra.mxu0 0
        %1324 = vmatprep.subr.bf16.mxu0 0
        %1325 = vmatpush1.bf16.msra.mxu0 0
        %1326 = vmatprep.mubr.bf16.mxu0 0
        %1327 = vmatmul.mubr.bf16.gmra.mrb[0].mxu0 %v1289
        %v1328 = vpop.f32.mrb[0].mxu0
        %v1329 = vadd.f32 0.0, %v1328
        %v1330 = vpop.f32.mrb[0].mxu0
        %v1331 = vpop.f32.mrb[0].mxu0
        %v1332 = vpop.f32.mrb[0].mxu0
        %1333 = vdwg.mxu0
        %v1334 = vmul.f32 %v1329, %v1284
        %v1335 = vpack.c.bf16 %v1334, %v1334
        %v1337 = vsel %vm755, %v1335, 0
        %v1340 = vsel %vm818, %v751, 0
        %1342 = vmatprep.subr.bf16.mxu0 0
        %1343 = vmatpush1.bf16.msra.mxu0 %v1340
        %1344 = vmatprep.subr.bf16.mxu0 0
        %1345 = vmatpush1.bf16.msra.mxu0 0
        %1346 = vmatprep.subr.bf16.mxu0 0
        %1347 = vmatpush1.bf16.msra.mxu0 0
        %1348 = vmatprep.subr.bf16.mxu0 0
        %1349 = vmatpush1.bf16.msra.mxu0 0
        %1350 = vmatprep.subr.bf16.mxu0 0
        %1351 = vmatpush1.bf16.msra.mxu0 0
        %1352 = vmatprep.subr.bf16.mxu0 0
        %1353 = vmatpush1.bf16.msra.mxu0 0
        %1354 = vmatprep.subr.bf16.mxu0 0
        %1355 = vmatpush1.bf16.msra.mxu0 0
        %1356 = vmatprep.subr.bf16.mxu0 0
        %1357 = vmatpush1.bf16.msra.mxu0 0
        %1358 = vmatprep.subr.bf16.mxu0 0
        %1359 = vmatpush1.bf16.msra.mxu0 0
        %1360 = vmatprep.subr.bf16.mxu0 0
        %1361 = vmatpush1.bf16.msra.mxu0 0
        %1362 = vmatprep.subr.bf16.mxu0 0
        %1363 = vmatpush1.bf16.msra.mxu0 0
        %1364 = vmatprep.subr.bf16.mxu0 0
        %1365 = vmatpush1.bf16.msra.mxu0 0
        %1366 = vmatprep.subr.bf16.mxu0 0
        %1367 = vmatpush1.bf16.msra.mxu0 0
        %1368 = vmatprep.subr.bf16.mxu0 0
        %1369 = vmatpush1.bf16.msra.mxu0 0
        %1370 = vmatprep.subr.bf16.mxu0 0
        %1371 = vmatpush1.bf16.msra.mxu0 0
        %1372 = vmatprep.subr.bf16.mxu0 0
        %1373 = vmatpush1.bf16.msra.mxu0 0
        %1374 = vmatprep.mubr.bf16.mxu0 0
        %1375 = vmatmul.mubr.bf16.gmra.mrb[0].mxu0 %v1337
        %v1376 = vpop.f32.mrb[0].mxu0
        %v1377 = vadd.f32 0.0, %v1376
        %v1378 = vpop.f32.mrb[0].mxu0
        %v1379 = vpop.f32.mrb[0].mxu0
        %v1380 = vpop.f32.mrb[0].mxu0
        %1381 = vdwg.mxu0
        %v1382 = vadd.f32 %v1224, %v1377
        %v1383 = vadd.f32 %v648, %v1382
        %v1384 = vld [vmem:[%s617] sm:$0x1]
        %v1386 = vlaneseq
        %v1387 = vshrl.u32 %v1386, 7
        %v1388 = vsub.s32 0, %v1387
        %v1389 = vrot.slane %v1384, %v1388
        %v1391 = vadd.f32 %v1383, %v1389
        %v1392 = vld [vmem:[%s620] sm:$0x1]
        %v1393 = vld [vmem:[%s623] sm:$0x1]
        %v1394 = vsel %vm651, %v1391, 0.0
        %1395 = vadd.xlane.f32.xlu0 %v1394
        %v1396 = vpop.xlane.xlu0 %1395
        %v1397 = vmul.f32 %v1396, %v655
        %v1398 = vsub.f32 %v1391, %v1397
        %v1399 = vmul.f32 %v1398, %v1398
        %v1400 = vsel %vm651, %v1399, 0.0
        %1401 = vadd.xlane.f32.xlu0 %v1400
        %v1402 = vpop.xlane.xlu0 %1401
        %v1403 = vmul.f32 %v1402, %v655
        %v1404 = vadd.f32 %v1403, 1e-05
        %v1405 = vrsqrt.pop %v1404
        %v1406 = vmul.f32 %v1398, %v1405
        %v1408 = vlaneseq
        %v1409 = vshrl.u32 %v1408, 7
        %v1410 = vsub.s32 0, %v1409
        %v1411 = vrot.slane %v1392, %v1410
        %v1413 = vmul.f32 %v1406, %v1411
        %v1415 = vlaneseq
        %v1416 = vshrl.u32 %v1415, 7
        %v1417 = vsub.s32 0, %v1416
        %v1418 = vrot.slane %v1393, %v1417
        %v1420 = vadd.f32 %v1413, %v1418
        %v1421 = vpack.c.bf16 %v1420, %v1420
        %v1422 = vld [vmem:[%s628] sm:$0xf]
        %v1423 = vld [vmem:[%s628 + $0x4] sm:$0xf]
        %v1424 = vld [vmem:[%s628 + $0x8] sm:$0xf]
        %v1425 = vld [vmem:[%s628 + $0xc] sm:$0xf]
        %v1426 = vld [vmem:[%s631] sm:$0x1]
        %v1428 = vlaneseq
        %v1429 = vshrl.u32 %v1428, 7
        %v1430 = vsub.s32 0, %v1429
        %v1431 = vrot.slane %v1426, %v1430
        %v1437 = vunpack.c.l.b16 %v1422
        %v1438 = vunpack.c.l.b16 %v1423
        %v1439 = vunpack.c.l.b16 %v1424
        %v1440 = vunpack.c.l.b16 %v1425
        %v1441 = vpack.c.b16 %v1438, %v1437
        %v1442 = vpack.c.b16 %v1440, %v1439
        %v1446 = vsel %vm651, %v1421, 0
        %1448 = vmatprep.subr.bf16.mxu0 0
        %1449 = vmatpush1.bf16.msra.mxu0 %v1441
        %1450 = vmatprep.subr.bf16.mxu0 0
        %1451 = vmatpush1.bf16.msra.mxu0 %v1442
        %1452 = vmatprep.subr.bf16.mxu0 0
        %1453 = vmatpush1.bf16.msra.mxu0 0
        %1454 = vmatprep.subr.bf16.mxu0 0
        %1455 = vmatpush1.bf16.msra.mxu0 0
        %1456 = vmatprep.subr.bf16.mxu0 0
        %1457 = vmatpush1.bf16.msra.mxu0 0
        %1458 = vmatprep.subr.bf16.mxu0 0
        %1459 = vmatpush1.bf16.msra.mxu0 0
        %1460 = vmatprep.subr.bf16.mxu0 0
        %1461 = vmatpush1.bf16.msra.mxu0 0
        %1462 = vmatprep.subr.bf16.mxu0 0
        %1463 = vmatpush1.bf16.msra.mxu0 0
        %1464 = vmatprep.subr.bf16.mxu0 0
        %1465 = vmatpush1.bf16.msra.mxu0 0
        %1466 = vmatprep.subr.bf16.mxu0 0
        %1467 = vmatpush1.bf16.msra.mxu0 0
        %1468 = vmatprep.subr.bf16.mxu0 0
        %1469 = vmatpush1.bf16.msra.mxu0 0
        %1470 = vmatprep.subr.bf16.mxu0 0
        %1471 = vmatpush1.bf16.msra.mxu0 0
        %1472 = vmatprep.subr.bf16.mxu0 0
        %1473 = vmatpush1.bf16.msra.mxu0 0
        %1474 = vmatprep.subr.bf16.mxu0 0
        %1475 = vmatpush1.bf16.msra.mxu0 0
        %1476 = vmatprep.subr.bf16.mxu0 0
        %1477 = vmatpush1.bf16.msra.mxu0 0
        %1478 = vmatprep.subr.bf16.mxu0 0
        %1479 = vmatpush1.bf16.msra.mxu0 0
        %1480 = vmatprep.mubr.bf16.mxu0 0
        %1481 = vmatmul.mubr.bf16.gmra.mrb[0].mxu0 %v1446
        %v1482 = vpop.f32.mrb[0].mxu0
        %v1483 = vadd.f32 %v1431, %v1482
        %v1484 = vpop.f32.mrb[0].mxu0
        %v1485 = vpop.f32.mrb[0].mxu0
        %v1486 = vpop.f32.mrb[0].mxu0
        %1487 = vdwg.mxu0
        %v1488 = vmul.f32 %v1483, 0.5
        %v1489 = vmul.f32 %v1483, 0.70710677
        %v1490 = verf.f32.pop %v1489
        %v1491 = vadd.f32 %v1490, 1.0
        %v1492 = vmul.f32 %v1488, %v1491
        %v1493 = vpack.c.bf16 %v1492, %v1492
        %v1494 = vld [vmem:[%s636] sm:$0xf]
        %v1495 = vld [vmem:[%s636 + $0x4] sm:$0xf]
        %v1496 = vld [vmem:[%s636 + $0x8] sm:$0xf]
        %v1497 = vld [vmem:[%s636 + $0xc] sm:$0xf]
        %v1498 = vld [vmem:[%s636 + $0x10] sm:$0xf]
        %v1499 = vld [vmem:[%s636 + $0x14] sm:$0xf]
        %v1500 = vld [vmem:[%s636 + $0x18] sm:$0xf]
        %v1501 = vld [vmem:[%s636 + $0x1c] sm:$0xf]
        %v1502 = vld [vmem:[%s636 + $0x20] sm:$0xf]
        %v1503 = vld [vmem:[%s636 + $0x24] sm:$0xf]
        %v1504 = vld [vmem:[%s636 + $0x28] sm:$0xf]
        %v1505 = vld [vmem:[%s636 + $0x2c] sm:$0xf]
        %v1506 = vld [vmem:[%s636 + $0x30] sm:$0xf]
        %v1507 = vld [vmem:[%s636 + $0x34] sm:$0xf]
        %v1508 = vld [vmem:[%s636 + $0x38] sm:$0xf]
        %v1509 = vld [vmem:[%s636 + $0x3c] sm:$0xf]
        %v1510 = vld [vmem:[%s639] sm:$0x1]
        %v1512 = vlaneseq
        %v1513 = vshrl.u32 %v1512, 7
        %v1514 = vsub.s32 0, %v1513
        %v1515 = vrot.slane %v1510, %v1514
        %v1533 = vunpack.c.l.b16 %v1494
        %v1534 = vunpack.c.l.b16 %v1495
        %v1535 = vunpack.c.l.b16 %v1496
        %v1536 = vunpack.c.l.b16 %v1497
        %v1537 = vunpack.c.l.b16 %v1498
        %v1538 = vunpack.c.l.b16 %v1499
        %v1539 = vunpack.c.l.b16 %v1500
        %v1540 = vunpack.c.l.b16 %v1501
        %v1541 = vunpack.c.l.b16 %v1502
        %v1542 = vunpack.c.l.b16 %v1503
        %v1543 = vunpack.c.l.b16 %v1504
        %v1544 = vunpack.c.l.b16 %v1505
        %v1545 = vunpack.c.l.b16 %v1506
        %v1546 = vunpack.c.l.b16 %v1507
        %v1547 = vunpack.c.l.b16 %v1508
        %v1548 = vunpack.c.l.b16 %v1509
        %v1549 = vpack.c.b16 %v1534, %v1533
        %v1550 = vpack.c.b16 %v1536, %v1535
        %v1551 = vpack.c.b16 %v1538, %v1537
        %v1552 = vpack.c.b16 %v1540, %v1539
        %v1553 = vpack.c.b16 %v1542, %v1541
        %v1554 = vpack.c.b16 %v1544, %v1543
        %v1555 = vpack.c.b16 %v1546, %v1545
        %v1556 = vpack.c.b16 %v1548, %v1547
        %1565 = vmatprep.subr.bf16.mxu0 0
        %1566 = vmatpush1.bf16.msra.mxu0 %v1549
        %1567 = vmatprep.subr.bf16.mxu0 0
        %1568 = vmatpush1.bf16.msra.mxu0 %v1550
        %1569 = vmatprep.subr.bf16.mxu0 0
        %1570 = vmatpush1.bf16.msra.mxu0 %v1551
        %1571 = vmatprep.subr.bf16.mxu0 0
        %1572 = vmatpush1.bf16.msra.mxu0 %v1552
        %1573 = vmatprep.subr.bf16.mxu0 0
        %1574 = vmatpush1.bf16.msra.mxu0 %v1553
        %1575 = vmatprep.subr.bf16.mxu0 0
        %1576 = vmatpush1.bf16.msra.mxu0 %v1554
        %1577 = vmatprep.subr.bf16.mxu0 0
        %1578 = vmatpush1.bf16.msra.mxu0 %v1555
        %1579 = vmatprep.subr.bf16.mxu0 0
        %1580 = vmatpush1.bf16.msra.mxu0 %v1556
        %1581 = vmatprep.subr.bf16.mxu0 0
        %1582 = vmatpush1.bf16.msra.mxu0 0
        %1583 = vmatprep.subr.bf16.mxu0 0
        %1584 = vmatpush1.bf16.msra.mxu0 0
        %1585 = vmatprep.subr.bf16.mxu0 0
        %1586 = vmatpush1.bf16.msra.mxu0 0
        %1587 = vmatprep.subr.bf16.mxu0 0
        %1588 = vmatpush1.bf16.msra.mxu0 0
        %1589 = vmatprep.subr.bf16.mxu0 0
        %1590 = vmatpush1.bf16.msra.mxu0 0
        %1591 = vmatprep.subr.bf16.mxu0 0
        %1592 = vmatpush1.bf16.msra.mxu0 0
        %1593 = vmatprep.subr.bf16.mxu0 0
        %1594 = vmatpush1.bf16.msra.mxu0 0
        %1595 = vmatprep.subr.bf16.mxu0 0
        %1596 = vmatpush1.bf16.msra.mxu0 0
        %1597 = vmatprep.mubr.bf16.mxu0 0
        %1598 = vmatmul.mubr.bf16.gmra.mrb[0].mxu0 %v1493
        %v1599 = vpop.f32.mrb[0].mxu0
        %v1600 = vadd.f32 %v1515, %v1599
        %v1601 = vpop.f32.mrb[0].mxu0
        %v1602 = vpop.f32.mrb[0].mxu0
        %v1603 = vpop.f32.mrb[0].mxu0
        %1604 = vdwg.mxu0
        %v1605 = vadd.f32 %v1391, %v1600
        %1606 = vst.msk [vmem:[%s591] sm:$0xff] %vm651, %v1605
        %s1607 = sand.u32 %s385, 1
        %s1608 = scalar_lea.sflag [#allocation3], %s1607
        %s1609 = sand.u32 %s385, 1
        %s1610 = smul.addr %s1609, 8
        %s1611 = scalar_lea.vmem [#allocation2], %s1610
        // Predicated region
        $region77: #{tpu_custom_call.1} parent=71 // pred_check
          %p1612 = pneg %p395
        $region78: #{tpu_custom_call.1} parent=71 // pred_check_branch
          %1614 = sbr.rel (%p1612) target = $region80
        $region79: #{tpu_custom_call.1} parent=71 // pred_region
          %s1616 = ssub.s32 128, 128
          %1617 = vsyncadd %s1608, %s1616
          %s1618 = smul.addr %s31, 128
          %s1619 = scalar_lea.hbm %s13, %s1618
          %s1621 = sshll.u32 %s1611, 4
          %s1622 = int_to_ptr.vmem [resolvable:$true] %s1621
          %1624 = dma.vmem_to_hbm [thread:$0]  %s1622, 128, %s1619, %s1608
        $region80: #{tpu_custom_call.1} parent=71 // pred_fallthru
          _
      $region72: #{tpu_custom_call.1} parent=5 // pred_fallthru
        _
      %p1625 = scmp.le.s32.totalorder 2, %s22
      // Predicated region
      $region81: #{tpu_custom_call.1} parent=5 // pred_check
        %p1626 = pneg %p1625
      $region82: #{tpu_custom_call.1} parent=5 // pred_check_branch
        %1628 = sbr.rel (%p1626) target = $region84
      $region83: #{tpu_custom_call.1} parent=5 // pred_region
        %s1629 = ssub.s32 %s22, 2
        // Predicated region
        $region85: #{tpu_custom_call.1} parent=83 // pred_check
          %p1630 = pneg %p401
        $region86: #{tpu_custom_call.1} parent=83 // pred_check_branch
          %1632 = sbr.rel (%p1630) target = $region88
        $region87: #{tpu_custom_call.1} parent=83 // pred_region
          %s1633 = sand.u32 %s386, 1
          %s1634 = scalar_lea.sflag [#allocation3], %s1633
          %s1635 = sand.u32 %s386, 1
          %s1636 = smul.addr %s1635, 8
          %s1637 = scalar_lea.vmem [#allocation2], %s1636
          %1638 = dma.done %s1634, 128
        $region88: #{tpu_custom_call.1} parent=83 // pred_fallthru
          _
      $region84: #{tpu_custom_call.1} parent=5 // pred_fallthru
        _
    $region6: #{tpu_custom_call.1} parent=1 // loop_footer
      %s26 = sadd.s32 1, %s22
    $region7: #{tpu_custom_call.1} parent=1 // loop_footer_branch
      %21 = sbr.rel target = $region3
    $region8: #{tpu_custom_call.1} parent=1 // loop_exit
      _
    %1639 = vsyncpa [#allocation3], 1
    %s1640 = scalar_lea.sflag [#allocation3], 1
    %1641 = vsyncpa %s1640, 1

</llo_original>
